<compile_context>
chip_gen: v5e
topology: v5e:2x2
jax: 0.10.0
libtpu: 0.0.40
codegen_flags: <defaults>
</compile_context>

<pallas_src>
import math

import jax
import jax.numpy as jnp
from jax import lax
from jax.experimental import pallas as pl
from jax.experimental.pallas import tpu as pltpu

# ----------------------------- config (small) --------------------------------
CFG = dict(
    vocab_size=128,
    context_length=8,
    emb_dim=32,
    n_heads=4,
    n_layers=2,
    drop_rate=0.0,
    qkv_bias=False,
)
EPS = 1e-5


# ----------------------------- LayerNorm (the spec module) -------------------
def _layernorm(x, scale, shift):
    # mean / biased variance over the last dim, exactly like the PyTorch module
    mean = jnp.mean(x, axis=-1, keepdims=True)
    var = jnp.mean((x - mean) ** 2, axis=-1, keepdims=True)   # unbiased=False
    return scale * ((x - mean) * lax.rsqrt(var + EPS)) + shift


# ----------------------------- fused transformer-stack kernel ----------------
def make_blocks_kernel(num_heads):
    def kernel(
        x_ref,                      # (BT, D)  f32   embeddings (read at layer 0)
        mask_ref,                   # (BT, BT) f32   additive mask (0 / -inf)
        ln1_s_ref, ln1_b_ref,       # (1, D)   f32
        wq_ref, wk_ref, wv_ref,     # (D, D)   bf16  (in x out)
        wo_ref, bo_ref,             # (D, D)   bf16, (1, D) f32
        ln2_s_ref, ln2_b_ref,       # (1, D)   f32
        w1_ref, b1_ref,             # (D, 4D)  bf16, (1, 4D) f32
        w2_ref, b2_ref,             # (4D, D)  bf16, (1, D) f32
        out_ref,                    # (BT, D)  f32   VMEM-resident across layers
    ):
        layer = pl.program_id(0)

        @pl.when(layer == 0)
        def _init():
            out_ref[...] = x_ref[...]

        x = out_ref[...]                              # (BT, D) f32
        BT, D = x.shape
        hd = D // num_heads
        inv_sqrt_hd = 1.0 / math.sqrt(hd)

        # ---- LayerNorm 1 + multi-head causal self-attention ----
        xn = _layernorm(x, ln1_s_ref[...], ln1_b_ref[...]).astype(jnp.bfloat16)
        q = jnp.dot(xn, wq_ref[...], preferred_element_type=jnp.float32)
        k = jnp.dot(xn, wk_ref[...], preferred_element_type=jnp.float32)
        v = jnp.dot(xn, wv_ref[...], preferred_element_type=jnp.float32)

        mask = mask_ref[...]                          # 0 where allowed, -inf else
        wo = wo_ref[...]                              # (D, D) bf16
        attn = jnp.zeros((BT, D), jnp.float32)

        for h in range(num_heads):                    # tiny static unroll, all in vregs
            sl = slice(h * hd, (h + 1) * hd)
            qh = q[:, sl].astype(jnp.bfloat16)
            kh = k[:, sl].astype(jnp.bfloat16)
            vh = v[:, sl].astype(jnp.bfloat16)
            # scores = qh @ kh^T, scale BEFORE masking, then additive -inf mask
            s = lax.dot_general(qh, kh, (((1,), (1,)), ((), ())),
                                preferred_element_type=jnp.float32)
            s = s * inv_sqrt_hd + mask                # (BT, BT)
            m = jnp.max(s, axis=-1, keepdims=True)
            p = jnp.exp(s - m)
            p = p * pl.reciprocal(jnp.sum(p, axis=-1, keepdims=True), approx=True)
            ctx_h = jnp.dot(p.astype(jnp.bfloat16), vh,
                            preferred_element_type=jnp.float32)   # (BT, hd)
            # project this head straight into the (BT, D) accumulator
            attn = attn + jnp.dot(ctx_h.astype(jnp.bfloat16), wo[sl, :],
                                  preferred_element_type=jnp.float32)

        x = x + attn + bo_ref[...]                    # residual 1

        # ---- LayerNorm 2 + FeedForward (GELU tanh approximation) ----
        xn2 = _layernorm(x, ln2_s_ref[...], ln2_b_ref[...]).astype(jnp.bfloat16)
        h1 = jnp.dot(xn2, w1_ref[...], preferred_element_type=jnp.float32) + b1_ref[...]
        g = 0.5 * h1 * (1.0 + jnp.tanh(
            math.sqrt(2.0 / math.pi) * (h1 + 0.044715 * (h1 * h1 * h1))))
        h2 = jnp.dot(g.astype(jnp.bfloat16), w2_ref[...],
                     preferred_element_type=jnp.float32) + b2_ref[...]

        out_ref[...] = x + h2                         # residual 2 (single lane-dense store)

    return kernel


def gpt_blocks(x2, attn_mask, blocks, num_heads):
    """Run all transformer blocks in one pallas_call (layer axis = grid)."""
    BT, D = x2.shape
    L = blocks["wq"].shape[0]
    H4 = 4 * D

    def w_spec(*dims):
        # stacked per-layer parameter: leading layer dim squeezed out of the kernel view
        return pl.BlockSpec((None,) + dims, lambda l: (l,) + (0,) * len(dims))

    def full2(r, c):
        return pl.BlockSpec((r, c), lambda l: (0, 0))

    return pl.pallas_call(
        make_blocks_kernel(num_heads),
        grid=(L,),
        in_specs=[
            full2(BT, D),                               # x (embeddings)
            full2(BT, BT),                              # additive attention mask
            w_spec(1, D), w_spec(1, D),                 # ln1 scale/shift
            w_spec(D, D), w_spec(D, D), w_spec(D, D),   # Wq^T, Wk^T, Wv^T
            w_spec(D, D), w_spec(1, D),                 # Wo^T, bo
            w_spec(1, D), w_spec(1, D),                 # ln2 scale/shift
            w_spec(D, H4), w_spec(1, H4),               # W1^T, b1
            w_spec(H4, D), w_spec(1, D),                # W2^T, b2
        ],
        out_specs=pl.BlockSpec((BT, D), lambda l: (0, 0)),   # resident across layers
        out_shape=jax.ShapeDtypeStruct((BT, D), jnp.float32),
        compiler_params=pltpu.CompilerParams(
            dimension_semantics=("arbitrary",)),        # layers are sequential
    )(
        x2, attn_mask,
        blocks["ln1_s"], blocks["ln1_b"],
        blocks["wq"], blocks["wk"], blocks["wv"],
        blocks["wo"], blocks["bo"],
        blocks["ln2_s"], blocks["ln2_b"],
        blocks["w1"], blocks["b1"],
        blocks["w2"], blocks["b2"],
    )


# ----------------------------- final LayerNorm + vocab projection ------------
def final_head_kernel(x_ref, fs_ref, fb_ref, wout_ref, out_ref):
    # x_ref: (BT, D) f32; wout_ref: (D, VT) bf16; out_ref: (BT, VT) f32
    xn = _layernorm(x_ref[...], fs_ref[...], fb_ref[...]).astype(jnp.bfloat16)
    out_ref[...] = jnp.dot(xn, wout_ref[...], preferred_element_type=jnp.float32)


def final_norm_head(x2, fs, fb, wout_t):
    BT, D = x2.shape
    V = wout_t.shape[1]
    VT = 128                                            # 128-lane column tiles
    assert V % VT == 0
    return pl.pallas_call(
        final_head_kernel,
        grid=(V // VT,),
        in_specs=[
            pl.BlockSpec((BT, D), lambda j: (0, 0)),
            pl.BlockSpec((1, D), lambda j: (0, 0)),
            pl.BlockSpec((1, D), lambda j: (0, 0)),
            pl.BlockSpec((D, VT), lambda j: (0, j)),    # tile the vocab axis
        ],
        out_specs=pl.BlockSpec((BT, VT), lambda j: (0, j)),
        out_shape=jax.ShapeDtypeStruct((BT, V), jnp.float32),
        compiler_params=pltpu.CompilerParams(
            dimension_semantics=("arbitrary",)),
    )(x2, fs, fb, wout_t)


# ----------------------------- params -----------------------------------------
def init_params(key, cfg):
    D = cfg["emb_dim"]
    V = cfg["vocab_size"]
    C = cfg["context_length"]
    L = cfg["n_layers"]
    H4 = 4 * D

    def nrm(k, shape, dtype=jnp.float32):
        return (jax.random.normal(k, shape, jnp.float32) * 0.02).astype(dtype)

    keys = jax.random.split(key, 11)
    return {
        "tok_emb": nrm(keys[0], (V, D)),
        "pos_emb": nrm(keys[1], (C, D)),
        "out_w_t": nrm(keys[2], (D, V), jnp.bfloat16),          # (in x out), bf16 MXU operand
        "final_s": jnp.ones((1, D), jnp.float32),
        "final_b": jnp.zeros((1, D), jnp.float32),
        "blocks": {                                              # stacked per-layer params
            "ln1_s": jnp.ones((L, 1, D), jnp.float32),
            "ln1_b": jnp.zeros((L, 1, D), jnp.float32),
            "wq": nrm(keys[3], (L, D, D), jnp.bfloat16),
            "wk": nrm(keys[4], (L, D, D), jnp.bfloat16),
            "wv": nrm(keys[5], (L, D, D), jnp.bfloat16),
            "wo": nrm(keys[6], (L, D, D), jnp.bfloat16),
            "bo": nrm(keys[7], (L, 1, D)),
            "ln2_s": jnp.ones((L, 1, D), jnp.float32),
            "ln2_b": jnp.zeros((L, 1, D), jnp.float32),
            "w1": nrm(keys[8], (L, D, H4), jnp.bfloat16),
            "b1": nrm(keys[9], (L, 1, H4)),
            "w2": nrm(keys[10], (L, H4, D), jnp.bfloat16),
            "b2": jnp.zeros((L, 1, D), jnp.float32),
        },
    }


# ----------------------------- forward -----------------------------------------
def gpt_forward(params, in_idx, cfg):
    B, T = in_idx.shape
    D = cfg["emb_dim"]
    H = cfg["n_heads"]
    V = cfg["vocab_size"]

    # embedding gather + positional add kept in plain JAX (glue)
    tok = jnp.take(params["tok_emb"], in_idx, axis=0)            # (B, T, D)
    pos = params["pos_emb"][:T]                                   # (T, D)
    x = tok + pos[None, :, :]
    # drop_emb: identity (eval mode)

    # fold batch into rows -> (B*T, D)
    x2 = x.reshape(B * T, D)

    # packed-sequence causal mask built once (0 where allowed, -inf elsewhere)
    ridx = jnp.arange(B * T)
    row, col = ridx[:, None], ridx[None, :]
    allowed = (col <= row) & ((row // T) == (col // T))
    attn_mask = jnp.where(allowed, 0.0, -jnp.inf).astype(jnp.float32)

    x2 = gpt_blocks(x2, attn_mask, params["blocks"], H)
    logits = final_norm_head(x2, params["final_s"], params["final_b"],
                             params["out_w_t"])
    return logits.reshape(B, T, V)


# ----------------------------- main ---------------------------------------------
if __name__ == "__main__":
    key = jax.random.PRNGKey(0)
    pkey, dkey = jax.random.split(key)

    params = init_params(pkey, CFG)

    batch_size, seq_len = 2, CFG["context_length"]               # (2, 8)
    in_idx = jax.random.randint(dkey, (batch_size, seq_len), 0, CFG["vocab_size"],
                                dtype=jnp.int32)

    logits = jax.block_until_ready(gpt_forward(params, in_idx, CFG))

    assert logits.shape == (batch_size, seq_len, CFG["vocab_size"])
    assert bool(jnp.all(jnp.isfinite(logits)))
    print("KERNEL_OK")
</pallas_src>

<mosaic_0001>
module attributes {stable_mosaic.version = 11 : i64} {
  func.func @kernel(%arg0: i32, %arg1: memref<16x32xf32, #tpu.memory_space<vmem>>, %arg2: memref<16x16xf32, #tpu.memory_space<vmem>>, %arg3: memref<1x1x32xf32, #tpu.memory_space<vmem>>, %arg4: memref<1x1x32xf32, #tpu.memory_space<vmem>>, %arg5: memref<1x32x32xbf16, #tpu.memory_space<vmem>>, %arg6: memref<1x32x32xbf16, #tpu.memory_space<vmem>>, %arg7: memref<1x32x32xbf16, #tpu.memory_space<vmem>>, %arg8: memref<1x32x32xbf16, #tpu.memory_space<vmem>>, %arg9: memref<1x1x32xf32, #tpu.memory_space<vmem>>, %arg10: memref<1x1x32xf32, #tpu.memory_space<vmem>>, %arg11: memref<1x1x32xf32, #tpu.memory_space<vmem>>, %arg12: memref<1x32x128xbf16, #tpu.memory_space<vmem>>, %arg13: memref<1x1x128xf32, #tpu.memory_space<vmem>>, %arg14: memref<1x128x32xbf16, #tpu.memory_space<vmem>>, %arg15: memref<1x1x32xf32, #tpu.memory_space<vmem>>, %arg16: memref<16x32xf32, #tpu.memory_space<vmem>>) attributes {dimension_semantics = [#tpu.dimension_semantics<arbitrary>], iteration_bounds = array<i64: 2>, scalar_prefetch = 0 : i64, scratch_operands = 0 : i64, tpu.core_type = #tpu.core_type<tc>, window_params = [{pipeline_mode = #tpu.pipeline_mode<synchronous>, transform_indices = @transform_0, window_bounds = array<i64: 16, 32>}, {pipeline_mode = #tpu.pipeline_mode<synchronous>, transform_indices = @transform_1, window_bounds = array<i64: 16, 16>}, {transform_indices = @transform_2, window_bounds = array<i64: 1, 1, 32>}, {transform_indices = @transform_3, window_bounds = array<i64: 1, 1, 32>}, {transform_indices = @transform_4, window_bounds = array<i64: 1, 32, 32>}, {transform_indices = @transform_5, window_bounds = array<i64: 1, 32, 32>}, {transform_indices = @transform_6, window_bounds = array<i64: 1, 32, 32>}, {transform_indices = @transform_7, window_bounds = array<i64: 1, 32, 32>}, {transform_indices = @transform_8, window_bounds = array<i64: 1, 1, 32>}, {transform_indices = @transform_9, window_bounds = array<i64: 1, 1, 32>}, {transform_indices = @transform_10, window_bounds = array<i64: 1, 1, 32>}, {transform_indices = @transform_11, window_bounds = array<i64: 1, 32, 128>}, {transform_indices = @transform_12, window_bounds = array<i64: 1, 1, 128>}, {transform_indices = @transform_13, window_bounds = array<i64: 1, 128, 32>}, {transform_indices = @transform_14, window_bounds = array<i64: 1, 1, 32>}, {pipeline_mode = #tpu.pipeline_mode<synchronous>, transform_indices = @transform_15, window_bounds = array<i64: 16, 32>}]} {
    %c0_i32 = arith.constant 0 : i32
    %0 = arith.cmpi eq, %arg0, %c0_i32 : i32
    %1 = arith.extui %0 : i1 to i32
    %c0_i32_0 = arith.constant 0 : i32
    %2 = arith.cmpi ne, %1, %c0_i32_0 : i32
    scf.if %2 {
      %c0_88 = arith.constant 0 : index
      %c0_89 = arith.constant 0 : index
      %210 = vector.load %arg1[%c0_88, %c0_89] : memref<16x32xf32, #tpu.memory_space<vmem>>, vector<16x32xf32>
      %c0_90 = arith.constant 0 : index
      %c0_91 = arith.constant 0 : index
      %211 = vector.load %arg16[%c0_90, %c0_91] : memref<16x32xf32, #tpu.memory_space<vmem>>, vector<16x32xf32>
      tpu.vector_store %arg16[%c0_90, %c0_91], %210 {strides = array<i32>} : memref<16x32xf32, #tpu.memory_space<vmem>>, vector<16x32xf32>,
    } else {
    }
    %c0 = arith.constant 0 : index
    %c0_1 = arith.constant 0 : index
    %3 = vector.load %arg16[%c0, %c0_1] : memref<16x32xf32, #tpu.memory_space<vmem>>, vector<16x32xf32>
    %c0_2 = arith.constant 0 : index
    %c0_3 = arith.constant 0 : index
    %c0_4 = arith.constant 0 : index
    %4 = vector.load %arg3[%c0_2, %c0_3, %c0_4] : memref<1x1x32xf32, #tpu.memory_space<vmem>>, vector<1x1x32xf32>
    %5 = vector.shape_cast %4 : vector<1x1x32xf32> to vector<1x32xf32>
    %c0_5 = arith.constant 0 : index
    %c0_6 = arith.constant 0 : index
    %c0_7 = arith.constant 0 : index
    %6 = vector.load %arg4[%c0_5, %c0_6, %c0_7] : memref<1x1x32xf32, #tpu.memory_space<vmem>>, vector<1x1x32xf32>
    %7 = vector.shape_cast %6 : vector<1x1x32xf32> to vector<1x32xf32>
    %cst = arith.constant dense<0.000000e+00> : vector<16xf32>
    %8 = vector.multi_reduction <add>, %3, %cst [1] : vector<16x32xf32> to vector<16xf32>
    %9 = vector.shape_cast %8 : vector<16xf32> to vector<16x1xf32>
    %cst_8 = arith.constant 3.200000e+01 : f32
    %10 = vector.broadcast %cst_8 : f32 to vector<16x1xf32>
    %11 = arith.divf %9, %10 : vector<16x1xf32>
    %12 = vector.broadcast %11 : vector<16x1xf32> to vector<16x32xf32>
    %13 = arith.subf %3, %12 : vector<16x32xf32>
    %14 = arith.mulf %13, %13 : vector<16x32xf32>
    %cst_9 = arith.constant dense<0.000000e+00> : vector<16xf32>
    %15 = vector.multi_reduction <add>, %14, %cst_9 [1] : vector<16x32xf32> to vector<16xf32>
    %16 = vector.shape_cast %15 : vector<16xf32> to vector<16x1xf32>
    %cst_10 = arith.constant 3.200000e+01 : f32
    %17 = vector.broadcast %cst_10 : f32 to vector<16x1xf32>
    %18 = arith.divf %16, %17 : vector<16x1xf32>
    %19 = vector.broadcast %11 : vector<16x1xf32> to vector<16x32xf32>
    %20 = arith.subf %3, %19 : vector<16x32xf32>
    %cst_11 = arith.constant 9.99999974E-6 : f32
    %21 = vector.broadcast %cst_11 : f32 to vector<16x1xf32>
    %22 = arith.addf %18, %21 : vector<16x1xf32>
    %23 = math.rsqrt %22 : vector<16x1xf32>
    %24 = vector.broadcast %23 : vector<16x1xf32> to vector<16x32xf32>
    %25 = arith.mulf %20, %24 : vector<16x32xf32>
    %26 = vector.broadcast %5 : vector<1x32xf32> to vector<16x32xf32>
    %27 = arith.mulf %26, %25 : vector<16x32xf32>
    %28 = vector.broadcast %7 : vector<1x32xf32> to vector<16x32xf32>
    %29 = arith.addf %27, %28 : vector<16x32xf32>
    %30 = arith.truncf %29 : vector<16x32xf32> to vector<16x32xbf16>
    %c0_12 = arith.constant 0 : index
    %c0_13 = arith.constant 0 : index
    %c0_14 = arith.constant 0 : index
    %31 = vector.load %arg5[%c0_12, %c0_13, %c0_14] : memref<1x32x32xbf16, #tpu.memory_space<vmem>>, vector<1x32x32xbf16>
    %32 = vector.shape_cast %31 : vector<1x32x32xbf16> to vector<32x32xbf16>
    %cst_15 = arith.constant dense<0.000000e+00> : vector<16x32xf32>
    %33 = tpu.matmul %30, %32, %cst_15 {dimension_numbers = #tpu.dot_dimension_numbers<[1], [0], [0], [1], [0, 0, 1, 1], [], []>} : vector<16x32xbf16>, vector<32x32xbf16>, vector<16x32xf32> -> vector<16x32xf32>
    %c0_16 = arith.constant 0 : index
    %c0_17 = arith.constant 0 : index
    %c0_18 = arith.constant 0 : index
    %34 = vector.load %arg6[%c0_16, %c0_17, %c0_18] : memref<1x32x32xbf16, #tpu.memory_space<vmem>>, vector<1x32x32xbf16>
    %35 = vector.shape_cast %34 : vector<1x32x32xbf16> to vector<32x32xbf16>
    %cst_19 = arith.constant dense<0.000000e+00> : vector<16x32xf32>
    %36 = tpu.matmul %30, %35, %cst_19 {dimension_numbers = #tpu.dot_dimension_numbers<[1], [0], [0], [1], [0, 0, 1, 1], [], []>} : vector<16x32xbf16>, vector<32x32xbf16>, vector<16x32xf32> -> vector<16x32xf32>
    %c0_20 = arith.constant 0 : index
    %c0_21 = arith.constant 0 : index
    %c0_22 = arith.constant 0 : index
    %37 = vector.load %arg7[%c0_20, %c0_21, %c0_22] : memref<1x32x32xbf16, #tpu.memory_space<vmem>>, vector<1x32x32xbf16>
    %38 = vector.shape_cast %37 : vector<1x32x32xbf16> to vector<32x32xbf16>
    %cst_23 = arith.constant dense<0.000000e+00> : vector<16x32xf32>
    %39 = tpu.matmul %30, %38, %cst_23 {dimension_numbers = #tpu.dot_dimension_numbers<[1], [0], [0], [1], [0, 0, 1, 1], [], []>} : vector<16x32xbf16>, vector<32x32xbf16>, vector<16x32xf32> -> vector<16x32xf32>
    %c0_24 = arith.constant 0 : index
    %c0_25 = arith.constant 0 : index
    %40 = vector.load %arg2[%c0_24, %c0_25] : memref<16x16xf32, #tpu.memory_space<vmem>>, vector<16x16xf32>
    %c0_26 = arith.constant 0 : index
    %c0_27 = arith.constant 0 : index
    %c0_28 = arith.constant 0 : index
    %41 = vector.load %arg8[%c0_26, %c0_27, %c0_28] : memref<1x32x32xbf16, #tpu.memory_space<vmem>>, vector<1x32x32xbf16>
    %42 = vector.shape_cast %41 : vector<1x32x32xbf16> to vector<32x32xbf16>
    %cst_29 = arith.constant 0.000000e+00 : f32
    %43 = vector.broadcast %cst_29 : f32 to vector<16x32xf32>
    %44 = vector.extract_strided_slice %33 {offsets = [0, 0], sizes = [16, 8], strides = [1, 1]} : vector<16x32xf32> to vector<16x8xf32>
    %45 = arith.truncf %44 : vector<16x8xf32> to vector<16x8xbf16>
    %46 = vector.extract_strided_slice %36 {offsets = [0, 0], sizes = [16, 8], strides = [1, 1]} : vector<16x32xf32> to vector<16x8xf32>
    %47 = arith.truncf %46 : vector<16x8xf32> to vector<16x8xbf16>
    %48 = vector.extract_strided_slice %39 {offsets = [0, 0], sizes = [16, 8], strides = [1, 1]} : vector<16x32xf32> to vector<16x8xf32>
    %49 = arith.truncf %48 : vector<16x8xf32> to vector<16x8xbf16>
    %cst_30 = arith.constant dense<0.000000e+00> : vector<16x16xf32>
    %50 = tpu.matmul %45, %47, %cst_30 {dimension_numbers = #tpu.dot_dimension_numbers<[1], [1], [0], [0], [0, 0, 1, 0], [], []>} : vector<16x8xbf16>, vector<16x8xbf16>, vector<16x16xf32> -> vector<16x16xf32>
    %cst_31 = arith.constant 0.353553385 : f32
    %51 = vector.broadcast %cst_31 : f32 to vector<16x16xf32>
    %52 = arith.mulf %50, %51 : vector<16x16xf32>
    %53 = arith.addf %52, %40 : vector<16x16xf32>
    %cst_32 = arith.constant dense<0xFF800000> : vector<16xf32>
    %54 = vector.multi_reduction <maximumf>, %53, %cst_32 [1] : vector<16x16xf32> to vector<16xf32>
    %55 = vector.shape_cast %54 : vector<16xf32> to vector<16x1xf32>
    %56 = vector.broadcast %55 : vector<16x1xf32> to vector<16x16xf32>
    %57 = arith.subf %53, %56 : vector<16x16xf32>
    %58 = math.exp %57 : vector<16x16xf32>
    %cst_33 = arith.constant dense<0.000000e+00> : vector<16xf32>
    %59 = vector.multi_reduction <add>, %58, %cst_33 [1] : vector<16x16xf32> to vector<16xf32>
    %60 = vector.shape_cast %59 : vector<16xf32> to vector<16x1xf32>
    %61 = tpu.reciprocal %60 {approx = true} : vector<16x1xf32> -> vector<16x1xf32>
    %62 = vector.broadcast %61 : vector<16x1xf32> to vector<16x16xf32>
    %63 = arith.mulf %58, %62 : vector<16x16xf32>
    %64 = arith.truncf %63 : vector<16x16xf32> to vector<16x16xbf16>
    %cst_34 = arith.constant dense<0.000000e+00> : vector<16x8xf32>
    %65 = tpu.matmul %64, %49, %cst_34 {dimension_numbers = #tpu.dot_dimension_numbers<[1], [0], [0], [1], [0, 0, 1, 1], [], []>} : vector<16x16xbf16>, vector<16x8xbf16>, vector<16x8xf32> -> vector<16x8xf32>
    %66 = arith.truncf %65 : vector<16x8xf32> to vector<16x8xbf16>
    %67 = vector.extract_strided_slice %42 {offsets = [0, 0], sizes = [8, 32], strides = [1, 1]} : vector<32x32xbf16> to vector<8x32xbf16>
    %cst_35 = arith.constant dense<0.000000e+00> : vector<16x32xf32>
    %68 = tpu.matmul %66, %67, %cst_35 {dimension_numbers = #tpu.dot_dimension_numbers<[1], [0], [0], [1], [0, 0, 1, 1], [], []>} : vector<16x8xbf16>, vector<8x32xbf16>, vector<16x32xf32> -> vector<16x32xf32>
    %69 = arith.addf %43, %68 : vector<16x32xf32>
    %70 = vector.extract_strided_slice %33 {offsets = [0, 8], sizes = [16, 8], strides = [1, 1]} : vector<16x32xf32> to vector<16x8xf32>
    %71 = arith.truncf %70 : vector<16x8xf32> to vector<16x8xbf16>
    %72 = vector.extract_strided_slice %36 {offsets = [0, 8], sizes = [16, 8], strides = [1, 1]} : vector<16x32xf32> to vector<16x8xf32>
    %73 = arith.truncf %72 : vector<16x8xf32> to vector<16x8xbf16>
    %74 = vector.extract_strided_slice %39 {offsets = [0, 8], sizes = [16, 8], strides = [1, 1]} : vector<16x32xf32> to vector<16x8xf32>
    %75 = arith.truncf %74 : vector<16x8xf32> to vector<16x8xbf16>
    %cst_36 = arith.constant dense<0.000000e+00> : vector<16x16xf32>
    %76 = tpu.matmul %71, %73, %cst_36 {dimension_numbers = #tpu.dot_dimension_numbers<[1], [1], [0], [0], [0, 0, 1, 0], [], []>} : vector<16x8xbf16>, vector<16x8xbf16>, vector<16x16xf32> -> vector<16x16xf32>
    %cst_37 = arith.constant 0.353553385 : f32
    %77 = vector.broadcast %cst_37 : f32 to vector<16x16xf32>
    %78 = arith.mulf %76, %77 : vector<16x16xf32>
    %79 = arith.addf %78, %40 : vector<16x16xf32>
    %cst_38 = arith.constant dense<0xFF800000> : vector<16xf32>
    %80 = vector.multi_reduction <maximumf>, %79, %cst_38 [1] : vector<16x16xf32> to vector<16xf32>
    %81 = vector.shape_cast %80 : vector<16xf32> to vector<16x1xf32>
    %82 = vector.broadcast %81 : vector<16x1xf32> to vector<16x16xf32>
    %83 = arith.subf %79, %82 : vector<16x16xf32>
    %84 = math.exp %83 : vector<16x16xf32>
    %cst_39 = arith.constant dense<0.000000e+00> : vector<16xf32>
    %85 = vector.multi_reduction <add>, %84, %cst_39 [1] : vector<16x16xf32> to vector<16xf32>
    %86 = vector.shape_cast %85 : vector<16xf32> to vector<16x1xf32>
    %87 = tpu.reciprocal %86 {approx = true} : vector<16x1xf32> -> vector<16x1xf32>
    %88 = vector.broadcast %87 : vector<16x1xf32> to vector<16x16xf32>
    %89 = arith.mulf %84, %88 : vector<16x16xf32>
    %90 = arith.truncf %89 : vector<16x16xf32> to vector<16x16xbf16>
    %cst_40 = arith.constant dense<0.000000e+00> : vector<16x8xf32>
    %91 = tpu.matmul %90, %75, %cst_40 {dimension_numbers = #tpu.dot_dimension_numbers<[1], [0], [0], [1], [0, 0, 1, 1], [], []>} : vector<16x16xbf16>, vector<16x8xbf16>, vector<16x8xf32> -> vector<16x8xf32>
    %92 = arith.truncf %91 : vector<16x8xf32> to vector<16x8xbf16>
    %93 = vector.extract_strided_slice %42 {offsets = [8, 0], sizes = [8, 32], strides = [1, 1]} : vector<32x32xbf16> to vector<8x32xbf16>
    %cst_41 = arith.constant dense<0.000000e+00> : vector<16x32xf32>
    %94 = tpu.matmul %92, %93, %cst_41 {dimension_numbers = #tpu.dot_dimension_numbers<[1], [0], [0], [1], [0, 0, 1, 1], [], []>} : vector<16x8xbf16>, vector<8x32xbf16>, vector<16x32xf32> -> vector<16x32xf32>
    %95 = arith.addf %69, %94 : vector<16x32xf32>
    %96 = vector.extract_strided_slice %33 {offsets = [0, 16], sizes = [16, 8], strides = [1, 1]} : vector<16x32xf32> to vector<16x8xf32>
    %97 = arith.truncf %96 : vector<16x8xf32> to vector<16x8xbf16>
    %98 = vector.extract_strided_slice %36 {offsets = [0, 16], sizes = [16, 8], strides = [1, 1]} : vector<16x32xf32> to vector<16x8xf32>
    %99 = arith.truncf %98 : vector<16x8xf32> to vector<16x8xbf16>
    %100 = vector.extract_strided_slice %39 {offsets = [0, 16], sizes = [16, 8], strides = [1, 1]} : vector<16x32xf32> to vector<16x8xf32>
    %101 = arith.truncf %100 : vector<16x8xf32> to vector<16x8xbf16>
    %cst_42 = arith.constant dense<0.000000e+00> : vector<16x16xf32>
    %102 = tpu.matmul %97, %99, %cst_42 {dimension_numbers = #tpu.dot_dimension_numbers<[1], [1], [0], [0], [0, 0, 1, 0], [], []>} : vector<16x8xbf16>, vector<16x8xbf16>, vector<16x16xf32> -> vector<16x16xf32>
    %cst_43 = arith.constant 0.353553385 : f32
    %103 = vector.broadcast %cst_43 : f32 to vector<16x16xf32>
    %104 = arith.mulf %102, %103 : vector<16x16xf32>
    %105 = arith.addf %104, %40 : vector<16x16xf32>
    %cst_44 = arith.constant dense<0xFF800000> : vector<16xf32>
    %106 = vector.multi_reduction <maximumf>, %105, %cst_44 [1] : vector<16x16xf32> to vector<16xf32>
    %107 = vector.shape_cast %106 : vector<16xf32> to vector<16x1xf32>
    %108 = vector.broadcast %107 : vector<16x1xf32> to vector<16x16xf32>
    %109 = arith.subf %105, %108 : vector<16x16xf32>
    %110 = math.exp %109 : vector<16x16xf32>
    %cst_45 = arith.constant dense<0.000000e+00> : vector<16xf32>
    %111 = vector.multi_reduction <add>, %110, %cst_45 [1] : vector<16x16xf32> to vector<16xf32>
    %112 = vector.shape_cast %111 : vector<16xf32> to vector<16x1xf32>
    %113 = tpu.reciprocal %112 {approx = true} : vector<16x1xf32> -> vector<16x1xf32>
    %114 = vector.broadcast %113 : vector<16x1xf32> to vector<16x16xf32>
    %115 = arith.mulf %110, %114 : vector<16x16xf32>
    %116 = arith.truncf %115 : vector<16x16xf32> to vector<16x16xbf16>
    %cst_46 = arith.constant dense<0.000000e+00> : vector<16x8xf32>
    %117 = tpu.matmul %116, %101, %cst_46 {dimension_numbers = #tpu.dot_dimension_numbers<[1], [0], [0], [1], [0, 0, 1, 1], [], []>} : vector<16x16xbf16>, vector<16x8xbf16>, vector<16x8xf32> -> vector<16x8xf32>
    %118 = arith.truncf %117 : vector<16x8xf32> to vector<16x8xbf16>
    %119 = vector.extract_strided_slice %42 {offsets = [16, 0], sizes = [8, 32], strides = [1, 1]} : vector<32x32xbf16> to vector<8x32xbf16>
    %cst_47 = arith.constant dense<0.000000e+00> : vector<16x32xf32>
    %120 = tpu.matmul %118, %119, %cst_47 {dimension_numbers = #tpu.dot_dimension_numbers<[1], [0], [0], [1], [0, 0, 1, 1], [], []>} : vector<16x8xbf16>, vector<8x32xbf16>, vector<16x32xf32> -> vector<16x32xf32>
    %121 = arith.addf %95, %120 : vector<16x32xf32>
    %122 = vector.extract_strided_slice %33 {offsets = [0, 24], sizes = [16, 8], strides = [1, 1]} : vector<16x32xf32> to vector<16x8xf32>
    %123 = arith.truncf %122 : vector<16x8xf32> to vector<16x8xbf16>
    %124 = vector.extract_strided_slice %36 {offsets = [0, 24], sizes = [16, 8], strides = [1, 1]} : vector<16x32xf32> to vector<16x8xf32>
    %125 = arith.truncf %124 : vector<16x8xf32> to vector<16x8xbf16>
    %126 = vector.extract_strided_slice %39 {offsets = [0, 24], sizes = [16, 8], strides = [1, 1]} : vector<16x32xf32> to vector<16x8xf32>
    %127 = arith.truncf %126 : vector<16x8xf32> to vector<16x8xbf16>
    %cst_48 = arith.constant dense<0.000000e+00> : vector<16x16xf32>
    %128 = tpu.matmul %123, %125, %cst_48 {dimension_numbers = #tpu.dot_dimension_numbers<[1], [1], [0], [0], [0, 0, 1, 0], [], []>} : vector<16x8xbf16>, vector<16x8xbf16>, vector<16x16xf32> -> vector<16x16xf32>
    %cst_49 = arith.constant 0.353553385 : f32
    %129 = vector.broadcast %cst_49 : f32 to vector<16x16xf32>
    %130 = arith.mulf %128, %129 : vector<16x16xf32>
    %131 = arith.addf %130, %40 : vector<16x16xf32>
    %cst_50 = arith.constant dense<0xFF800000> : vector<16xf32>
    %132 = vector.multi_reduction <maximumf>, %131, %cst_50 [1] : vector<16x16xf32> to vector<16xf32>
    %133 = vector.shape_cast %132 : vector<16xf32> to vector<16x1xf32>
    %134 = vector.broadcast %133 : vector<16x1xf32> to vector<16x16xf32>
    %135 = arith.subf %131, %134 : vector<16x16xf32>
    %136 = math.exp %135 : vector<16x16xf32>
    %cst_51 = arith.constant dense<0.000000e+00> : vector<16xf32>
    %137 = vector.multi_reduction <add>, %136, %cst_51 [1] : vector<16x16xf32> to vector<16xf32>
    %138 = vector.shape_cast %137 : vector<16xf32> to vector<16x1xf32>
    %139 = tpu.reciprocal %138 {approx = true} : vector<16x1xf32> -> vector<16x1xf32>
    %140 = vector.broadcast %139 : vector<16x1xf32> to vector<16x16xf32>
    %141 = arith.mulf %136, %140 : vector<16x16xf32>
    %142 = arith.truncf %141 : vector<16x16xf32> to vector<16x16xbf16>
    %cst_52 = arith.constant dense<0.000000e+00> : vector<16x8xf32>
    %143 = tpu.matmul %142, %127, %cst_52 {dimension_numbers = #tpu.dot_dimension_numbers<[1], [0], [0], [1], [0, 0, 1, 1], [], []>} : vector<16x16xbf16>, vector<16x8xbf16>, vector<16x8xf32> -> vector<16x8xf32>
    %144 = arith.truncf %143 : vector<16x8xf32> to vector<16x8xbf16>
    %145 = vector.extract_strided_slice %42 {offsets = [24, 0], sizes = [8, 32], strides = [1, 1]} : vector<32x32xbf16> to vector<8x32xbf16>
    %cst_53 = arith.constant dense<0.000000e+00> : vector<16x32xf32>
    %146 = tpu.matmul %144, %145, %cst_53 {dimension_numbers = #tpu.dot_dimension_numbers<[1], [0], [0], [1], [0, 0, 1, 1], [], []>} : vector<16x8xbf16>, vector<8x32xbf16>, vector<16x32xf32> -> vector<16x32xf32>
    %147 = arith.addf %121, %146 : vector<16x32xf32>
    %148 = arith.addf %3, %147 : vector<16x32xf32>
    %c0_54 = arith.constant 0 : index
    %c0_55 = arith.constant 0 : index
    %c0_56 = arith.constant 0 : index
    %149 = vector.load %arg9[%c0_54, %c0_55, %c0_56] : memref<1x1x32xf32, #tpu.memory_space<vmem>>, vector<1x1x32xf32>
    %150 = vector.shape_cast %149 : vector<1x1x32xf32> to vector<1x32xf32>
    %151 = vector.broadcast %150 : vector<1x32xf32> to vector<16x32xf32>
    %152 = arith.addf %148, %151 : vector<16x32xf32>
    %c0_57 = arith.constant 0 : index
    %c0_58 = arith.constant 0 : index
    %c0_59 = arith.constant 0 : index
    %153 = vector.load %arg10[%c0_57, %c0_58, %c0_59] : memref<1x1x32xf32, #tpu.memory_space<vmem>>, vector<1x1x32xf32>
    %154 = vector.shape_cast %153 : vector<1x1x32xf32> to vector<1x32xf32>
    %c0_60 = arith.constant 0 : index
    %c0_61 = arith.constant 0 : index
    %c0_62 = arith.constant 0 : index
    %155 = vector.load %arg11[%c0_60, %c0_61, %c0_62] : memref<1x1x32xf32, #tpu.memory_space<vmem>>, vector<1x1x32xf32>
    %156 = vector.shape_cast %155 : vector<1x1x32xf32> to vector<1x32xf32>
    %cst_63 = arith.constant dense<0.000000e+00> : vector<16xf32>
    %157 = vector.multi_reduction <add>, %152, %cst_63 [1] : vector<16x32xf32> to vector<16xf32>
    %158 = vector.shape_cast %157 : vector<16xf32> to vector<16x1xf32>
    %cst_64 = arith.constant 3.200000e+01 : f32
    %159 = vector.broadcast %cst_64 : f32 to vector<16x1xf32>
    %160 = arith.divf %158, %159 : vector<16x1xf32>
    %161 = vector.broadcast %160 : vector<16x1xf32> to vector<16x32xf32>
    %162 = arith.subf %152, %161 : vector<16x32xf32>
    %163 = arith.mulf %162, %162 : vector<16x32xf32>
    %cst_65 = arith.constant dense<0.000000e+00> : vector<16xf32>
    %164 = vector.multi_reduction <add>, %163, %cst_65 [1] : vector<16x32xf32> to vector<16xf32>
    %165 = vector.shape_cast %164 : vector<16xf32> to vector<16x1xf32>
    %cst_66 = arith.constant 3.200000e+01 : f32
    %166 = vector.broadcast %cst_66 : f32 to vector<16x1xf32>
    %167 = arith.divf %165, %166 : vector<16x1xf32>
    %168 = vector.broadcast %160 : vector<16x1xf32> to vector<16x32xf32>
    %169 = arith.subf %152, %168 : vector<16x32xf32>
    %cst_67 = arith.constant 9.99999974E-6 : f32
    %170 = vector.broadcast %cst_67 : f32 to vector<16x1xf32>
    %171 = arith.addf %167, %170 : vector<16x1xf32>
    %172 = math.rsqrt %171 : vector<16x1xf32>
    %173 = vector.broadcast %172 : vector<16x1xf32> to vector<16x32xf32>
    %174 = arith.mulf %169, %173 : vector<16x32xf32>
    %175 = vector.broadcast %154 : vector<1x32xf32> to vector<16x32xf32>
    %176 = arith.mulf %175, %174 : vector<16x32xf32>
    %177 = vector.broadcast %156 : vector<1x32xf32> to vector<16x32xf32>
    %178 = arith.addf %176, %177 : vector<16x32xf32>
    %179 = arith.truncf %178 : vector<16x32xf32> to vector<16x32xbf16>
    %c0_68 = arith.constant 0 : index
    %c0_69 = arith.constant 0 : index
    %c0_70 = arith.constant 0 : index
    %180 = vector.load %arg12[%c0_68, %c0_69, %c0_70] : memref<1x32x128xbf16, #tpu.memory_space<vmem>>, vector<1x32x128xbf16>
    %181 = vector.shape_cast %180 : vector<1x32x128xbf16> to vector<32x128xbf16>
    %cst_71 = arith.constant dense<0.000000e+00> : vector<16x128xf32>
    %182 = tpu.matmul %179, %181, %cst_71 {dimension_numbers = #tpu.dot_dimension_numbers<[1], [0], [0], [1], [0, 0, 1, 1], [], []>} : vector<16x32xbf16>, vector<32x128xbf16>, vector<16x128xf32> -> vector<16x128xf32>
    %c0_72 = arith.constant 0 : index
    %c0_73 = arith.constant 0 : index
    %c0_74 = arith.constant 0 : index
    %183 = vector.load %arg13[%c0_72, %c0_73, %c0_74] : memref<1x1x128xf32, #tpu.memory_space<vmem>>, vector<1x1x128xf32>
    %184 = vector.shape_cast %183 : vector<1x1x128xf32> to vector<1x128xf32>
    %185 = vector.broadcast %184 : vector<1x128xf32> to vector<16x128xf32>
    %186 = arith.addf %182, %185 : vector<16x128xf32>
    %cst_75 = arith.constant 5.000000e-01 : f32
    %187 = vector.broadcast %cst_75 : f32 to vector<16x128xf32>
    %188 = arith.mulf %187, %186 : vector<16x128xf32>
    %189 = arith.mulf %186, %186 : vector<16x128xf32>
    %190 = arith.mulf %189, %186 : vector<16x128xf32>
    %cst_76 = arith.constant 4.471500e-02 : f32
    %191 = vector.broadcast %cst_76 : f32 to vector<16x128xf32>
    %192 = arith.mulf %191, %190 : vector<16x128xf32>
    %193 = arith.addf %186, %192 : vector<16x128xf32>
    %cst_77 = arith.constant 0.797884583 : f32
    %194 = vector.broadcast %cst_77 : f32 to vector<16x128xf32>
    %195 = arith.mulf %194, %193 : vector<16x128xf32>
    %196 = math.tanh %195 : vector<16x128xf32>
    %cst_78 = arith.constant 1.000000e+00 : f32
    %197 = vector.broadcast %cst_78 : f32 to vector<16x128xf32>
    %198 = arith.addf %197, %196 : vector<16x128xf32>
    %199 = arith.mulf %188, %198 : vector<16x128xf32>
    %200 = arith.truncf %199 : vector<16x128xf32> to vector<16x128xbf16>
    %c0_79 = arith.constant 0 : index
    %c0_80 = arith.constant 0 : index
    %c0_81 = arith.constant 0 : index
    %201 = vector.load %arg14[%c0_79, %c0_80, %c0_81] : memref<1x128x32xbf16, #tpu.memory_space<vmem>>, vector<1x128x32xbf16>
    %202 = vector.shape_cast %201 : vector<1x128x32xbf16> to vector<128x32xbf16>
    %cst_82 = arith.constant dense<0.000000e+00> : vector<16x32xf32>
    %203 = tpu.matmul %200, %202, %cst_82 {dimension_numbers = #tpu.dot_dimension_numbers<[1], [0], [0], [1], [0, 0, 1, 1], [], []>} : vector<16x128xbf16>, vector<128x32xbf16>, vector<16x32xf32> -> vector<16x32xf32>
    %c0_83 = arith.constant 0 : index
    %c0_84 = arith.constant 0 : index
    %c0_85 = arith.constant 0 : index
    %204 = vector.load %arg15[%c0_83, %c0_84, %c0_85] : memref<1x1x32xf32, #tpu.memory_space<vmem>>, vector<1x1x32xf32>
    %205 = vector.shape_cast %204 : vector<1x1x32xf32> to vector<1x32xf32>
    %206 = vector.broadcast %205 : vector<1x32xf32> to vector<16x32xf32>
    %207 = arith.addf %203, %206 : vector<16x32xf32>
    %208 = arith.addf %152, %207 : vector<16x32xf32>
    %c0_86 = arith.constant 0 : index
    %c0_87 = arith.constant 0 : index
    %209 = vector.load %arg16[%c0_86, %c0_87] : memref<16x32xf32, #tpu.memory_space<vmem>>, vector<16x32xf32>
    tpu.vector_store %arg16[%c0_86, %c0_87], %208 {strides = array<i32>} : memref<16x32xf32, #tpu.memory_space<vmem>>, vector<16x32xf32>,
    return
  }
  func.func @transform_0(%arg0: i32) -> (i32, i32) {
    %c0_i32 = arith.constant 0 : i32
    %c0_i32_0 = arith.constant 0 : i32
    %c0_i32_1 = arith.constant 0 : i32
    return %c0_i32, %c0_i32_0 : i32, i32
  }
  func.func @transform_1(%arg0: i32) -> (i32, i32) {
    %c0_i32 = arith.constant 0 : i32
    %c0_i32_0 = arith.constant 0 : i32
    %c0_i32_1 = arith.constant 0 : i32
    return %c0_i32, %c0_i32_0 : i32, i32
  }
  func.func @transform_2(%arg0: i32) -> (i32, i32, i32) {
    %c0_i32 = arith.constant 0 : i32
    %c0_i32_0 = arith.constant 0 : i32
    %c0_i32_1 = arith.constant 0 : i32
    return %arg0, %c0_i32, %c0_i32_0 : i32, i32, i32
  }
  func.func @transform_3(%arg0: i32) -> (i32, i32, i32) {
    %c0_i32 = arith.constant 0 : i32
    %c0_i32_0 = arith.constant 0 : i32
    %c0_i32_1 = arith.constant 0 : i32
    return %arg0, %c0_i32, %c0_i32_0 : i32, i32, i32
  }
  func.func @transform_4(%arg0: i32) -> (i32, i32, i32) {
    %c0_i32 = arith.constant 0 : i32
    %c0_i32_0 = arith.constant 0 : i32
    %c0_i32_1 = arith.constant 0 : i32
    return %arg0, %c0_i32, %c0_i32_0 : i32, i32, i32
  }
  func.func @transform_5(%arg0: i32) -> (i32, i32, i32) {
    %c0_i32 = arith.constant 0 : i32
    %c0_i32_0 = arith.constant 0 : i32
    %c0_i32_1 = arith.constant 0 : i32
    return %arg0, %c0_i32, %c0_i32_0 : i32, i32, i32
  }
  func.func @transform_6(%arg0: i32) -> (i32, i32, i32) {
    %c0_i32 = arith.constant 0 : i32
    %c0_i32_0 = arith.constant 0 : i32
    %c0_i32_1 = arith.constant 0 : i32
    return %arg0, %c0_i32, %c0_i32_0 : i32, i32, i32
  }
  func.func @transform_7(%arg0: i32) -> (i32, i32, i32) {
    %c0_i32 = arith.constant 0 : i32
    %c0_i32_0 = arith.constant 0 : i32
    %c0_i32_1 = arith.constant 0 : i32
    return %arg0, %c0_i32, %c0_i32_0 : i32, i32, i32
  }
  func.func @transform_8(%arg0: i32) -> (i32, i32, i32) {
    %c0_i32 = arith.constant 0 : i32
    %c0_i32_0 = arith.constant 0 : i32
    %c0_i32_1 = arith.constant 0 : i32
    return %arg0, %c0_i32, %c0_i32_0 : i32, i32, i32
  }
  func.func @transform_9(%arg0: i32) -> (i32, i32, i32) {
    %c0_i32 = arith.constant 0 : i32
    %c0_i32_0 = arith.constant 0 : i32
    %c0_i32_1 = arith.constant 0 : i32
    return %arg0, %c0_i32, %c0_i32_0 : i32, i32, i32
  }
  func.func @transform_10(%arg0: i32) -> (i32, i32, i32) {
    %c0_i32 = arith.constant 0 : i32
    %c0_i32_0 = arith.constant 0 : i32
    %c0_i32_1 = arith.constant 0 : i32
    return %arg0, %c0_i32, %c0_i32_0 : i32, i32, i32
  }
  func.func @transform_11(%arg0: i32) -> (i32, i32, i32) {
    %c0_i32 = arith.constant 0 : i32
    %c0_i32_0 = arith.constant 0 : i32
    %c0_i32_1 = arith.constant 0 : i32
    return %arg0, %c0_i32, %c0_i32_0 : i32, i32, i32
  }
  func.func @transform_12(%arg0: i32) -> (i32, i32, i32) {
    %c0_i32 = arith.constant 0 : i32
    %c0_i32_0 = arith.constant 0 : i32
    %c0_i32_1 = arith.constant 0 : i32
    return %arg0, %c0_i32, %c0_i32_0 : i32, i32, i32
  }
  func.func @transform_13(%arg0: i32) -> (i32, i32, i32) {
    %c0_i32 = arith.constant 0 : i32
    %c0_i32_0 = arith.constant 0 : i32
    %c0_i32_1 = arith.constant 0 : i32
    return %arg0, %c0_i32, %c0_i32_0 : i32, i32, i32
  }
  func.func @transform_14(%arg0: i32) -> (i32, i32, i32) {
    %c0_i32 = arith.constant 0 : i32
    %c0_i32_0 = arith.constant 0 : i32
    %c0_i32_1 = arith.constant 0 : i32
    return %arg0, %c0_i32, %c0_i32_0 : i32, i32, i32
  }
  func.func @transform_15(%arg0: i32) -> (i32, i32) {
    %c0_i32 = arith.constant 0 : i32
    %c0_i32_0 = arith.constant 0 : i32
    %c0_i32_1 = arith.constant 0 : i32
    return %c0_i32, %c0_i32_0 : i32, i32
  }
}

</mosaic_0001>

<llo_original>
// kernel: tpu_custom_call.1
$region0: #{tpu_custom_call.1}
  #allocation0 [shape = 'u32[]', space=smem, size = 0x4, offset = 0x4, fixed_abs, tag = 'smem constant byte address 0x4 - core index']
  #allocation1 [shape = 'u32[72,128]{1,0:T(1,128)}', space=vmem, size = 0x9000, scoped, tag = 'internal scratch']
  %s0 = inlined_call_operand.hbm [shape: f32[16,32], index: 0, kind: input, shape index: {}]
  %s1 = inlined_call_operand.hbm [shape: f32[16,16], index: 1, kind: input, shape index: {}]
  %s2 = inlined_call_operand.hbm [shape: f32[2,1,32], index: 2, kind: input, shape index: {}]
  %s3 = inlined_call_operand.hbm [shape: f32[2,1,32], index: 3, kind: input, shape index: {}]
  %s4 = inlined_call_operand.vmem [shape: bf16[2,32,32], index: 4, kind: input, shape index: {}]
  %s5 = inlined_call_operand.vmem [shape: bf16[2,32,32], index: 5, kind: input, shape index: {}]
  %s6 = inlined_call_operand.vmem [shape: bf16[2,32,32], index: 6, kind: input, shape index: {}]
  %s7 = inlined_call_operand.vmem [shape: bf16[2,32,32], index: 7, kind: input, shape index: {}]
  %s8 = inlined_call_operand.vmem [shape: f32[2,1,32], index: 8, kind: input, shape index: {}]
  %s9 = inlined_call_operand.vmem [shape: f32[2,1,32], index: 9, kind: input, shape index: {}]
  %s10 = inlined_call_operand.vmem [shape: f32[2,1,32], index: 10, kind: input, shape index: {}]
  %s11 = inlined_call_operand.vmem [shape: bf16[2,32,128], index: 11, kind: input, shape index: {}]
  %s12 = inlined_call_operand.vmem [shape: f32[2,1,128], index: 12, kind: input, shape index: {}]
  %s13 = inlined_call_operand.vmem [shape: bf16[2,128,32], index: 13, kind: input, shape index: {}]
  %s14 = inlined_call_operand.vmem [shape: f32[2,1,32], index: 14, kind: input, shape index: {}]
  %s15 = inlined_call_operand.hbm [shape: f32[16,32], index: 15, kind: output, shape index: {}]
  %s16 = sld [smem:[#allocation0]]
  $region113: #{tpu_custom_call.1} parent=0
    _
  %s18 = ssub.s32 1, %s16
  %s19 = scalar_select 0, %s18, %s16
  $region1: #{tpu_custom_call.1} parent=0
    #allocation2 [shape = 'u8[8192]{0}', space=vmem, size = 0x2000, scoped, tag = 'input window, operand 0, single buffered']
    #allocation3 [shape = 's32[2]{0}', space=sflag, size = 0x8, scoped, tag = 'scoped memory for tpu_custom_call.1']
    #allocation4 [shape = 's32[2]{0}', space=sflag, size = 0x8, scoped, tag = 'scoped memory for tpu_custom_call.1']
    #allocation5 [shape = 'u8[8192]{0}', space=vmem, size = 0x2000, scoped, tag = 'input window, operand 1, single buffered']
    #allocation6 [shape = 's32[1]{0}', space=sflag, size = 0x4, scoped, tag = 'scoped memory for tpu_custom_call.1']
    #allocation7 [shape = 'u8[1024]{0}', space=vmem, size = 0x400, scoped, tag = 'input window, operand 2']
    #allocation8 [shape = 'u8[1024]{0}', space=vmem, size = 0x400, scoped, tag = 'input window, operand 3']
    #allocation9 [shape = 'u8[8192]{0}', space=vmem, size = 0x2000, scoped, tag = 'output window, operand 0, single buffered']
    %20 = vsyncpa [#allocation3], 0
    %21 = vsyncpa [#allocation6], 0
    %22 = vsyncpa [#allocation4], 0
    loop: start=0, step=1, limit=4
    $region2: #{tpu_custom_call.1} parent=1 // loop_pre_header
      _
    $region3: #{tpu_custom_call.1} parent=1 // loop_header
      %s24 = sphi 0, %s28
      %p25 = scmp.ge.s32.totalorder %s24, 4
      %s32 = sphi 0, %s32
      %s34 = sphi 0, %s32
      %s35 = sphi 0, %s34
      %s49 = sphi 0, %s35
      %s53 = sphi 0, %s53
      %s55 = sphi 0, %s53
      %s56 = sphi 0, %s55
      %s70 = sphi 0, %s56
      %s76 = sphi 0, %s78
      %s79 = sphi 0, %s76
      %s80 = sphi 0, %s79
      %s96 = sphi 0, %s80
      %s102 = sphi 0, %s104
      %s105 = sphi 0, %s102
      %s106 = sphi 0, %s105
      %s122 = sphi 0, %s106
      %s128 = sphi 0, %s130
      %s131 = sphi 0, %s128
      %s132 = sphi 0, %s131
      %s148 = sphi 0, %s132
      %s154 = sphi 0, %s156
      %s157 = sphi 0, %s154
      %s158 = sphi 0, %s157
      %s174 = sphi 0, %s158
      %s180 = sphi 0, %s182
      %s183 = sphi 0, %s180
      %s184 = sphi 0, %s183
      %s200 = sphi 0, %s184
      %s206 = sphi 0, %s208
      %s209 = sphi 0, %s206
      %s210 = sphi 0, %s209
      %s226 = sphi 0, %s210
      %s232 = sphi 0, %s234
      %s235 = sphi 0, %s232
      %s236 = sphi 0, %s235
      %s252 = sphi 0, %s236
      %s258 = sphi 0, %s260
      %s261 = sphi 0, %s258
      %s262 = sphi 0, %s261
      %s278 = sphi 0, %s262
      %s284 = sphi 0, %s286
      %s287 = sphi 0, %s284
      %s288 = sphi 0, %s287
      %s304 = sphi 0, %s288
      %s310 = sphi 0, %s312
      %s313 = sphi 0, %s310
      %s314 = sphi 0, %s313
      %s330 = sphi 0, %s314
      %s336 = sphi 0, %s338
      %s339 = sphi 0, %s336
      %s340 = sphi 0, %s339
      %s356 = sphi 0, %s340
      %s362 = sphi 0, %s364
      %s365 = sphi 0, %s362
      %s366 = sphi 0, %s365
      %s382 = sphi 0, %s366
      %s388 = sphi 0, %s390
      %s391 = sphi 0, %s388
      %s392 = sphi 0, %s391
      %s408 = sphi 0, %s392
      %s412 = sphi 0, %s412
      %s414 = sphi 0, %s412
      %s415 = sphi 0, %s414
      %s429 = sphi 0, %s415
    $region4: #{tpu_custom_call.1} parent=1 // loop_header_branch
      %27 = sbr.rel (%p25) target = $region8
    $region5: #{tpu_custom_call.1} parent=1 // loop_body
      %s29 = ssub.s32 %s24, 1
      %s30 = ssub.s32 %s24, 2
      %s31 = sadd.s32 %s24, 1
      %s33 = sadd.s32 %s32, 1
      %p36 = scmp.eq.s32.totalorder %s24, 1
      %p37 = scmp.ne.s32.totalorder %s32, %s34
      %p38 = scmp.eq.s32.totalorder %s24, 0
      %p39 = por %p37, %p38
      %p40 = scmp.ne.s32.totalorder %s32, %s34
      %p41 = scmp.eq.s32.totalorder %s29, 1
      %p42 = por %p40, %p41
      %p43 = scmp.ne.s32.totalorder %s34, %s35
      %p44 = scmp.eq.s32.totalorder %s29, 0
      %p45 = por %p43, %p44
      %p46 = scmp.ne.s32.totalorder %s34, %s35
      %p47 = scmp.eq.s32.totalorder %s30, 1
      %p48 = por %p46, %p47
      %p50 = scmp.ne.s32.totalorder %s35, %s49
      %p51 = scmp.eq.s32.totalorder %s30, 0
      %p52 = por %p50, %p51
      %s54 = sadd.s32 %s53, 1
      %p57 = scmp.eq.s32.totalorder %s24, 1
      %p58 = scmp.ne.s32.totalorder %s53, %s55
      %p59 = scmp.eq.s32.totalorder %s24, 0
      %p60 = por %p58, %p59
      %p61 = scmp.ne.s32.totalorder %s53, %s55
      %p62 = scmp.eq.s32.totalorder %s29, 1
      %p63 = por %p61, %p62
      %p64 = scmp.ne.s32.totalorder %s55, %s56
      %p65 = scmp.eq.s32.totalorder %s29, 0
      %p66 = por %p64, %p65
      %p67 = scmp.ne.s32.totalorder %s55, %s56
      %p68 = scmp.eq.s32.totalorder %s30, 1
      %p69 = por %p67, %p68
      %p71 = scmp.ne.s32.totalorder %s56, %s70
      %p72 = scmp.eq.s32.totalorder %s30, 0
      %p73 = por %p71, %p72
      %s74 = ssub.s32 %s24, %s31
      %p75 = scmp.eq.s32.totalorder %s74, 0
      %s77 = sadd.s32 %s76, 1
      %s78 = scalar_select %p75, %s76, %s77
      %p81 = pneg %p75
      %p82 = scmp.eq.s32.totalorder %s24, 1
      %p83 = por %p81, %p82
      %p84 = scmp.ne.s32.totalorder %s76, %s79
      %p85 = scmp.eq.s32.totalorder %s24, 0
      %p86 = por %p84, %p85
      %p87 = scmp.ne.s32.totalorder %s76, %s79
      %p88 = scmp.eq.s32.totalorder %s29, 1
      %p89 = por %p87, %p88
      %p90 = scmp.ne.s32.totalorder %s79, %s80
      %p91 = scmp.eq.s32.totalorder %s29, 0
      %p92 = por %p90, %p91
      %p93 = scmp.ne.s32.totalorder %s79, %s80
      %p94 = scmp.eq.s32.totalorder %s30, 1
      %p95 = por %p93, %p94
      %p97 = scmp.ne.s32.totalorder %s80, %s96
      %p98 = scmp.eq.s32.totalorder %s30, 0
      %p99 = por %p97, %p98
      %s100 = ssub.s32 %s24, %s31
      %p101 = scmp.eq.s32.totalorder %s100, 0
      %s103 = sadd.s32 %s102, 1
      %s104 = scalar_select %p101, %s102, %s103
      %p107 = pneg %p101
      %p108 = scmp.eq.s32.totalorder %s24, 1
      %p109 = por %p107, %p108
      %p110 = scmp.ne.s32.totalorder %s102, %s105
      %p111 = scmp.eq.s32.totalorder %s24, 0
      %p112 = por %p110, %p111
      %p113 = scmp.ne.s32.totalorder %s102, %s105
      %p114 = scmp.eq.s32.totalorder %s29, 1
      %p115 = por %p113, %p114
      %p116 = scmp.ne.s32.totalorder %s105, %s106
      %p117 = scmp.eq.s32.totalorder %s29, 0
      %p118 = por %p116, %p117
      %p119 = scmp.ne.s32.totalorder %s105, %s106
      %p120 = scmp.eq.s32.totalorder %s30, 1
      %p121 = por %p119, %p120
      %p123 = scmp.ne.s32.totalorder %s106, %s122
      %p124 = scmp.eq.s32.totalorder %s30, 0
      %p125 = por %p123, %p124
      %s126 = ssub.s32 %s24, %s31
      %p127 = scmp.eq.s32.totalorder %s126, 0
      %s129 = sadd.s32 %s128, 1
      %s130 = scalar_select %p127, %s128, %s129
      %p133 = pneg %p127
      %p134 = scmp.eq.s32.totalorder %s24, 1
      %p135 = por %p133, %p134
      %p136 = scmp.ne.s32.totalorder %s128, %s131
      %p137 = scmp.eq.s32.totalorder %s24, 0
      %p138 = por %p136, %p137
      %p139 = scmp.ne.s32.totalorder %s128, %s131
      %p140 = scmp.eq.s32.totalorder %s29, 1
      %p141 = por %p139, %p140
      %p142 = scmp.ne.s32.totalorder %s131, %s132
      %p143 = scmp.eq.s32.totalorder %s29, 0
      %p144 = por %p142, %p143
      %p145 = scmp.ne.s32.totalorder %s131, %s132
      %p146 = scmp.eq.s32.totalorder %s30, 1
      %p147 = por %p145, %p146
      %p149 = scmp.ne.s32.totalorder %s132, %s148
      %p150 = scmp.eq.s32.totalorder %s30, 0
      %p151 = por %p149, %p150
      %s152 = ssub.s32 %s24, %s31
      %p153 = scmp.eq.s32.totalorder %s152, 0
      %s155 = sadd.s32 %s154, 1
      %s156 = scalar_select %p153, %s154, %s155
      %p159 = pneg %p153
      %p160 = scmp.eq.s32.totalorder %s24, 1
      %p161 = por %p159, %p160
      %p162 = scmp.ne.s32.totalorder %s154, %s157
      %p163 = scmp.eq.s32.totalorder %s24, 0
      %p164 = por %p162, %p163
      %p165 = scmp.ne.s32.totalorder %s154, %s157
      %p166 = scmp.eq.s32.totalorder %s29, 1
      %p167 = por %p165, %p166
      %p168 = scmp.ne.s32.totalorder %s157, %s158
      %p169 = scmp.eq.s32.totalorder %s29, 0
      %p170 = por %p168, %p169
      %p171 = scmp.ne.s32.totalorder %s157, %s158
      %p172 = scmp.eq.s32.totalorder %s30, 1
      %p173 = por %p171, %p172
      %p175 = scmp.ne.s32.totalorder %s158, %s174
      %p176 = scmp.eq.s32.totalorder %s30, 0
      %p177 = por %p175, %p176
      %s178 = ssub.s32 %s24, %s31
      %p179 = scmp.eq.s32.totalorder %s178, 0
      %s181 = sadd.s32 %s180, 1
      %s182 = scalar_select %p179, %s180, %s181
      %p185 = pneg %p179
      %p186 = scmp.eq.s32.totalorder %s24, 1
      %p187 = por %p185, %p186
      %p188 = scmp.ne.s32.totalorder %s180, %s183
      %p189 = scmp.eq.s32.totalorder %s24, 0
      %p190 = por %p188, %p189
      %p191 = scmp.ne.s32.totalorder %s180, %s183
      %p192 = scmp.eq.s32.totalorder %s29, 1
      %p193 = por %p191, %p192
      %p194 = scmp.ne.s32.totalorder %s183, %s184
      %p195 = scmp.eq.s32.totalorder %s29, 0
      %p196 = por %p194, %p195
      %p197 = scmp.ne.s32.totalorder %s183, %s184
      %p198 = scmp.eq.s32.totalorder %s30, 1
      %p199 = por %p197, %p198
      %p201 = scmp.ne.s32.totalorder %s184, %s200
      %p202 = scmp.eq.s32.totalorder %s30, 0
      %p203 = por %p201, %p202
      %s204 = ssub.s32 %s24, %s31
      %p205 = scmp.eq.s32.totalorder %s204, 0
      %s207 = sadd.s32 %s206, 1
      %s208 = scalar_select %p205, %s206, %s207
      %p211 = pneg %p205
      %p212 = scmp.eq.s32.totalorder %s24, 1
      %p213 = por %p211, %p212
      %p214 = scmp.ne.s32.totalorder %s206, %s209
      %p215 = scmp.eq.s32.totalorder %s24, 0
      %p216 = por %p214, %p215
      %p217 = scmp.ne.s32.totalorder %s206, %s209
      %p218 = scmp.eq.s32.totalorder %s29, 1
      %p219 = por %p217, %p218
      %p220 = scmp.ne.s32.totalorder %s209, %s210
      %p221 = scmp.eq.s32.totalorder %s29, 0
      %p222 = por %p220, %p221
      %p223 = scmp.ne.s32.totalorder %s209, %s210
      %p224 = scmp.eq.s32.totalorder %s30, 1
      %p225 = por %p223, %p224
      %p227 = scmp.ne.s32.totalorder %s210, %s226
      %p228 = scmp.eq.s32.totalorder %s30, 0
      %p229 = por %p227, %p228
      %s230 = ssub.s32 %s24, %s31
      %p231 = scmp.eq.s32.totalorder %s230, 0
      %s233 = sadd.s32 %s232, 1
      %s234 = scalar_select %p231, %s232, %s233
      %p237 = pneg %p231
      %p238 = scmp.eq.s32.totalorder %s24, 1
      %p239 = por %p237, %p238
      %p240 = scmp.ne.s32.totalorder %s232, %s235
      %p241 = scmp.eq.s32.totalorder %s24, 0
      %p242 = por %p240, %p241
      %p243 = scmp.ne.s32.totalorder %s232, %s235
      %p244 = scmp.eq.s32.totalorder %s29, 1
      %p245 = por %p243, %p244
      %p246 = scmp.ne.s32.totalorder %s235, %s236
      %p247 = scmp.eq.s32.totalorder %s29, 0
      %p248 = por %p246, %p247
      %p249 = scmp.ne.s32.totalorder %s235, %s236
      %p250 = scmp.eq.s32.totalorder %s30, 1
      %p251 = por %p249, %p250
      %p253 = scmp.ne.s32.totalorder %s236, %s252
      %p254 = scmp.eq.s32.totalorder %s30, 0
      %p255 = por %p253, %p254
      %s256 = ssub.s32 %s24, %s31
      %p257 = scmp.eq.s32.totalorder %s256, 0
      %s259 = sadd.s32 %s258, 1
      %s260 = scalar_select %p257, %s258, %s259
      %p263 = pneg %p257
      %p264 = scmp.eq.s32.totalorder %s24, 1
      %p265 = por %p263, %p264
      %p266 = scmp.ne.s32.totalorder %s258, %s261
      %p267 = scmp.eq.s32.totalorder %s24, 0
      %p268 = por %p266, %p267
      %p269 = scmp.ne.s32.totalorder %s258, %s261
      %p270 = scmp.eq.s32.totalorder %s29, 1
      %p271 = por %p269, %p270
      %p272 = scmp.ne.s32.totalorder %s261, %s262
      %p273 = scmp.eq.s32.totalorder %s29, 0
      %p274 = por %p272, %p273
      %p275 = scmp.ne.s32.totalorder %s261, %s262
      %p276 = scmp.eq.s32.totalorder %s30, 1
      %p277 = por %p275, %p276
      %p279 = scmp.ne.s32.totalorder %s262, %s278
      %p280 = scmp.eq.s32.totalorder %s30, 0
      %p281 = por %p279, %p280
      %s282 = ssub.s32 %s24, %s31
      %p283 = scmp.eq.s32.totalorder %s282, 0
      %s285 = sadd.s32 %s284, 1
      %s286 = scalar_select %p283, %s284, %s285
      %p289 = pneg %p283
      %p290 = scmp.eq.s32.totalorder %s24, 1
      %p291 = por %p289, %p290
      %p292 = scmp.ne.s32.totalorder %s284, %s287
      %p293 = scmp.eq.s32.totalorder %s24, 0
      %p294 = por %p292, %p293
      %p295 = scmp.ne.s32.totalorder %s284, %s287
      %p296 = scmp.eq.s32.totalorder %s29, 1
      %p297 = por %p295, %p296
      %p298 = scmp.ne.s32.totalorder %s287, %s288
      %p299 = scmp.eq.s32.totalorder %s29, 0
      %p300 = por %p298, %p299
      %p301 = scmp.ne.s32.totalorder %s287, %s288
      %p302 = scmp.eq.s32.totalorder %s30, 1
      %p303 = por %p301, %p302
      %p305 = scmp.ne.s32.totalorder %s288, %s304
      %p306 = scmp.eq.s32.totalorder %s30, 0
      %p307 = por %p305, %p306
      %s308 = ssub.s32 %s24, %s31
      %p309 = scmp.eq.s32.totalorder %s308, 0
      %s311 = sadd.s32 %s310, 1
      %s312 = scalar_select %p309, %s310, %s311
      %p315 = pneg %p309
      %p316 = scmp.eq.s32.totalorder %s24, 1
      %p317 = por %p315, %p316
      %p318 = scmp.ne.s32.totalorder %s310, %s313
      %p319 = scmp.eq.s32.totalorder %s24, 0
      %p320 = por %p318, %p319
      %p321 = scmp.ne.s32.totalorder %s310, %s313
      %p322 = scmp.eq.s32.totalorder %s29, 1
      %p323 = por %p321, %p322
      %p324 = scmp.ne.s32.totalorder %s313, %s314
      %p325 = scmp.eq.s32.totalorder %s29, 0
      %p326 = por %p324, %p325
      %p327 = scmp.ne.s32.totalorder %s313, %s314
      %p328 = scmp.eq.s32.totalorder %s30, 1
      %p329 = por %p327, %p328
      %p331 = scmp.ne.s32.totalorder %s314, %s330
      %p332 = scmp.eq.s32.totalorder %s30, 0
      %p333 = por %p331, %p332
      %s334 = ssub.s32 %s24, %s31
      %p335 = scmp.eq.s32.totalorder %s334, 0
      %s337 = sadd.s32 %s336, 1
      %s338 = scalar_select %p335, %s336, %s337
      %p341 = pneg %p335
      %p342 = scmp.eq.s32.totalorder %s24, 1
      %p343 = por %p341, %p342
      %p344 = scmp.ne.s32.totalorder %s336, %s339
      %p345 = scmp.eq.s32.totalorder %s24, 0
      %p346 = por %p344, %p345
      %p347 = scmp.ne.s32.totalorder %s336, %s339
      %p348 = scmp.eq.s32.totalorder %s29, 1
      %p349 = por %p347, %p348
      %p350 = scmp.ne.s32.totalorder %s339, %s340
      %p351 = scmp.eq.s32.totalorder %s29, 0
      %p352 = por %p350, %p351
      %p353 = scmp.ne.s32.totalorder %s339, %s340
      %p354 = scmp.eq.s32.totalorder %s30, 1
      %p355 = por %p353, %p354
      %p357 = scmp.ne.s32.totalorder %s340, %s356
      %p358 = scmp.eq.s32.totalorder %s30, 0
      %p359 = por %p357, %p358
      %s360 = ssub.s32 %s24, %s31
      %p361 = scmp.eq.s32.totalorder %s360, 0
      %s363 = sadd.s32 %s362, 1
      %s364 = scalar_select %p361, %s362, %s363
      %p367 = pneg %p361
      %p368 = scmp.eq.s32.totalorder %s24, 1
      %p369 = por %p367, %p368
      %p370 = scmp.ne.s32.totalorder %s362, %s365
      %p371 = scmp.eq.s32.totalorder %s24, 0
      %p372 = por %p370, %p371
      %p373 = scmp.ne.s32.totalorder %s362, %s365
      %p374 = scmp.eq.s32.totalorder %s29, 1
      %p375 = por %p373, %p374
      %p376 = scmp.ne.s32.totalorder %s365, %s366
      %p377 = scmp.eq.s32.totalorder %s29, 0
      %p378 = por %p376, %p377
      %p379 = scmp.ne.s32.totalorder %s365, %s366
      %p380 = scmp.eq.s32.totalorder %s30, 1
      %p381 = por %p379, %p380
      %p383 = scmp.ne.s32.totalorder %s366, %s382
      %p384 = scmp.eq.s32.totalorder %s30, 0
      %p385 = por %p383, %p384
      %s386 = ssub.s32 %s24, %s31
      %p387 = scmp.eq.s32.totalorder %s386, 0
      %s389 = sadd.s32 %s388, 1
      %s390 = scalar_select %p387, %s388, %s389
      %p393 = pneg %p387
      %p394 = scmp.eq.s32.totalorder %s24, 1
      %p395 = por %p393, %p394
      %p396 = scmp.ne.s32.totalorder %s388, %s391
      %p397 = scmp.eq.s32.totalorder %s24, 0
      %p398 = por %p396, %p397
      %p399 = scmp.ne.s32.totalorder %s388, %s391
      %p400 = scmp.eq.s32.totalorder %s29, 1
      %p401 = por %p399, %p400
      %p402 = scmp.ne.s32.totalorder %s391, %s392
      %p403 = scmp.eq.s32.totalorder %s29, 0
      %p404 = por %p402, %p403
      %p405 = scmp.ne.s32.totalorder %s391, %s392
      %p406 = scmp.eq.s32.totalorder %s30, 1
      %p407 = por %p405, %p406
      %p409 = scmp.ne.s32.totalorder %s392, %s408
      %p410 = scmp.eq.s32.totalorder %s30, 0
      %p411 = por %p409, %p410
      %s413 = sadd.s32 %s412, 1
      %p416 = scmp.eq.s32.totalorder %s24, 1
      %p417 = scmp.ne.s32.totalorder %s412, %s414
      %p418 = scmp.eq.s32.totalorder %s24, 0
      %p419 = por %p417, %p418
      %p420 = scmp.ne.s32.totalorder %s412, %s414
      %p421 = scmp.eq.s32.totalorder %s29, 1
      %p422 = por %p420, %p421
      %p423 = scmp.ne.s32.totalorder %s414, %s415
      %p424 = scmp.eq.s32.totalorder %s29, 0
      %p425 = por %p423, %p424
      %p426 = scmp.ne.s32.totalorder %s414, %s415
      %p427 = scmp.eq.s32.totalorder %s30, 1
      %p428 = por %p426, %p427
      %p430 = scmp.ne.s32.totalorder %s415, %s429
      %p431 = scmp.eq.s32.totalorder %s30, 0
      %p432 = por %p430, %p431
      %p433 = scmp.le.s32.totalorder 1, %s24
      %p434 = scmp.lt.s32.totalorder %s24, 3
      %p435 = pnand %p433, %p434
      %p436 = pneg %p435
      // Predicated region
      $region9: #{tpu_custom_call.1} parent=5 // pred_check
        _
      $region10: #{tpu_custom_call.1} parent=5 // pred_check_branch
        %438 = sbr.rel (%p435) target = $region12
      $region11: #{tpu_custom_call.1} parent=5 // pred_region
        %s439 = ssub.s32 %s24, 1
        // Predicated region
        $region13: #{tpu_custom_call.1} parent=11 // pred_check
          %p440 = pneg %p45
        $region14: #{tpu_custom_call.1} parent=11 // pred_check_branch
          %442 = sbr.rel (%p440) target = $region16
        $region15: #{tpu_custom_call.1} parent=11 // pred_region
          %444 = vsyncadd [#allocation3], 0
          %s445 = sshll.u32 %s0, 4
          %s446 = int_to_ptr.hbm [resolvable:$true] %s445
          %s447 = sshll.u32 [#allocation2], 4
          %s448 = int_to_ptr.vmem [resolvable:$true] %s447
          %453 = dma.hbm_to_vmem [thread:$0]  %s446, 256, %s448, [#allocation3], 128, 128, 8
        $region16: #{tpu_custom_call.1} parent=11 // pred_fallthru
          _
        // Predicated region
        $region17: #{tpu_custom_call.1} parent=11 // pred_check
          %p454 = pneg %p66
        $region18: #{tpu_custom_call.1} parent=11 // pred_check_branch
          %456 = sbr.rel (%p454) target = $region20
        $region19: #{tpu_custom_call.1} parent=11 // pred_region
          %458 = vsyncadd [#allocation6], 0
          %s459 = sshll.u32 %s1, 4
          %s460 = int_to_ptr.hbm [resolvable:$true] %s459
          %s461 = sshll.u32 [#allocation5], 4
          %s462 = int_to_ptr.vmem [resolvable:$true] %s461
          %467 = dma.hbm_to_vmem [thread:$0]  %s460, 256, %s462, [#allocation6], 128, 128, 8
        $region20: #{tpu_custom_call.1} parent=11 // pred_fallthru
          _
      $region12: #{tpu_custom_call.1} parent=5 // pred_fallthru
        _
      %p468 = scmp.lt.s32.totalorder %s24, 2
      // Predicated region
      $region21: #{tpu_custom_call.1} parent=5 // pred_check
        %p469 = pneg %p468
      $region22: #{tpu_custom_call.1} parent=5 // pred_check_branch
        %471 = sbr.rel (%p469) target = $region24
      $region23: #{tpu_custom_call.1} parent=5 // pred_region
        // Predicated region
        $region25: #{tpu_custom_call.1} parent=23 // pred_check
          %p472 = pneg %p86
        $region26: #{tpu_custom_call.1} parent=23 // pred_check_branch
          %474 = sbr.rel (%p472) target = $region28
        $region27: #{tpu_custom_call.1} parent=23 // pred_region
          %s475 = sand.u32 %s24, 1
          %s476 = scalar_lea.sflag [#allocation3], %s475
          %s477 = sand.u32 %s76, 1
          %s478 = scalar_lea.vmem [#allocation7], %s477
          %480 = vsyncadd %s476, 0
          %s481 = scalar_lea.hbm %s2, %s24
          %s483 = sshll.u32 %s481, 4
          %s484 = int_to_ptr.hbm [resolvable:$true] %s483
          %s485 = sshll.u32 %s478, 4
          %s486 = int_to_ptr.vmem [resolvable:$true] %s485
          %488 = dma.hbm_to_vmem [thread:$0]  %s484, 16, %s486, %s476
        $region28: #{tpu_custom_call.1} parent=23 // pred_fallthru
          _
        // Predicated region
        $region29: #{tpu_custom_call.1} parent=23 // pred_check
          %p489 = pneg %p112
        $region30: #{tpu_custom_call.1} parent=23 // pred_check_branch
          %491 = sbr.rel (%p489) target = $region32
        $region31: #{tpu_custom_call.1} parent=23 // pred_region
          %s492 = sand.u32 %s24, 1
          %s493 = scalar_lea.sflag [#allocation3], %s492
          %s494 = sand.u32 %s102, 1
          %s495 = scalar_lea.vmem [#allocation8], %s494
          %497 = vsyncadd %s493, 0
          %s498 = scalar_lea.hbm %s3, %s24
          %s500 = sshll.u32 %s498, 4
          %s501 = int_to_ptr.hbm [resolvable:$true] %s500
          %s502 = sshll.u32 %s495, 4
          %s503 = int_to_ptr.vmem [resolvable:$true] %s502
          %505 = dma.hbm_to_vmem [thread:$0]  %s501, 16, %s503, %s493
        $region32: #{tpu_custom_call.1} parent=23 // pred_fallthru
          _
        // Predicated region
        $region33: #{tpu_custom_call.1} parent=23 // pred_check
          %p506 = pneg %p138
        $region34: #{tpu_custom_call.1} parent=23 // pred_check_branch
          %508 = sbr.rel (%p506) target = $region36
        $region35: #{tpu_custom_call.1} parent=23 // pred_region
          %p509 = scmp.lt.s32.totalorder %s24, 1
          %s510 = scalar_select %p509, %s24, 1
          %s511 = smul.addr %s510, 4
          %s512 = smul.addr %s511, 4
          %s513 = scalar_lea.vmem %s4, %s512
        $region36: #{tpu_custom_call.1} parent=23 // pred_fallthru
          _
        // Predicated region
        $region37: #{tpu_custom_call.1} parent=23 // pred_check
          %p514 = pneg %p164
        $region38: #{tpu_custom_call.1} parent=23 // pred_check_branch
          %516 = sbr.rel (%p514) target = $region40
        $region39: #{tpu_custom_call.1} parent=23 // pred_region
          %p517 = scmp.lt.s32.totalorder %s24, 1
          %s518 = scalar_select %p517, %s24, 1
          %s519 = smul.addr %s518, 4
          %s520 = smul.addr %s519, 4
          %s521 = scalar_lea.vmem %s5, %s520
        $region40: #{tpu_custom_call.1} parent=23 // pred_fallthru
          _
        // Predicated region
        $region41: #{tpu_custom_call.1} parent=23 // pred_check
          %p522 = pneg %p190
        $region42: #{tpu_custom_call.1} parent=23 // pred_check_branch
          %524 = sbr.rel (%p522) target = $region44
        $region43: #{tpu_custom_call.1} parent=23 // pred_region
          %p525 = scmp.lt.s32.totalorder %s24, 1
          %s526 = scalar_select %p525, %s24, 1
          %s527 = smul.addr %s526, 4
          %s528 = smul.addr %s527, 4
          %s529 = scalar_lea.vmem %s6, %s528
        $region44: #{tpu_custom_call.1} parent=23 // pred_fallthru
          _
        // Predicated region
        $region45: #{tpu_custom_call.1} parent=23 // pred_check
          %p530 = pneg %p216
        $region46: #{tpu_custom_call.1} parent=23 // pred_check_branch
          %532 = sbr.rel (%p530) target = $region48
        $region47: #{tpu_custom_call.1} parent=23 // pred_region
          %p533 = scmp.lt.s32.totalorder %s24, 1
          %s534 = scalar_select %p533, %s24, 1
          %s535 = smul.addr %s534, 4
          %s536 = smul.addr %s535, 4
          %s537 = scalar_lea.vmem %s7, %s536
        $region48: #{tpu_custom_call.1} parent=23 // pred_fallthru
          _
        // Predicated region
        $region49: #{tpu_custom_call.1} parent=23 // pred_check
          %p538 = pneg %p242
        $region50: #{tpu_custom_call.1} parent=23 // pred_check_branch
          %540 = sbr.rel (%p538) target = $region52
        $region51: #{tpu_custom_call.1} parent=23 // pred_region
          %p541 = scmp.lt.s32.totalorder %s24, 1
          %s542 = scalar_select %p541, %s24, 1
          %s543 = scalar_lea.vmem %s8, %s542
        $region52: #{tpu_custom_call.1} parent=23 // pred_fallthru
          _
        // Predicated region
        $region53: #{tpu_custom_call.1} parent=23 // pred_check
          %p544 = pneg %p268
        $region54: #{tpu_custom_call.1} parent=23 // pred_check_branch
          %546 = sbr.rel (%p544) target = $region56
        $region55: #{tpu_custom_call.1} parent=23 // pred_region
          %p547 = scmp.lt.s32.totalorder %s24, 1
          %s548 = scalar_select %p547, %s24, 1
          %s549 = scalar_lea.vmem %s9, %s548
        $region56: #{tpu_custom_call.1} parent=23 // pred_fallthru
          _
        // Predicated region
        $region57: #{tpu_custom_call.1} parent=23 // pred_check
          %p550 = pneg %p294
        $region58: #{tpu_custom_call.1} parent=23 // pred_check_branch
          %552 = sbr.rel (%p550) target = $region60
        $region59: #{tpu_custom_call.1} parent=23 // pred_region
          %p553 = scmp.lt.s32.totalorder %s24, 1
          %s554 = scalar_select %p553, %s24, 1
          %s555 = scalar_lea.vmem %s10, %s554
        $region60: #{tpu_custom_call.1} parent=23 // pred_fallthru
          _
        // Predicated region
        $region61: #{tpu_custom_call.1} parent=23 // pred_check
          %p556 = pneg %p320
        $region62: #{tpu_custom_call.1} parent=23 // pred_check_branch
          %558 = sbr.rel (%p556) target = $region64
        $region63: #{tpu_custom_call.1} parent=23 // pred_region
          %p559 = scmp.lt.s32.totalorder %s24, 1
          %s560 = scalar_select %p559, %s24, 1
          %s561 = smul.addr %s560, 4
          %s562 = smul.addr %s561, 4
          %s563 = scalar_lea.vmem %s11, %s562
        $region64: #{tpu_custom_call.1} parent=23 // pred_fallthru
          _
        // Predicated region
        $region65: #{tpu_custom_call.1} parent=23 // pred_check
          %p564 = pneg %p346
        $region66: #{tpu_custom_call.1} parent=23 // pred_check_branch
          %566 = sbr.rel (%p564) target = $region68
        $region67: #{tpu_custom_call.1} parent=23 // pred_region
          %p567 = scmp.lt.s32.totalorder %s24, 1
          %s568 = scalar_select %p567, %s24, 1
          %s569 = scalar_lea.vmem %s12, %s568
        $region68: #{tpu_custom_call.1} parent=23 // pred_fallthru
          _
        // Predicated region
        $region69: #{tpu_custom_call.1} parent=23 // pred_check
          %p570 = pneg %p372
        $region70: #{tpu_custom_call.1} parent=23 // pred_check_branch
          %572 = sbr.rel (%p570) target = $region72
        $region71: #{tpu_custom_call.1} parent=23 // pred_region
          %p573 = scmp.lt.s32.totalorder %s24, 1
          %s574 = scalar_select %p573, %s24, 1
          %s575 = smul.addr %s574, 16
          %s576 = smul.addr %s575, 4
          %s577 = scalar_lea.vmem %s13, %s576
        $region72: #{tpu_custom_call.1} parent=23 // pred_fallthru
          _
        // Predicated region
        $region73: #{tpu_custom_call.1} parent=23 // pred_check
          %p578 = pneg %p398
        $region74: #{tpu_custom_call.1} parent=23 // pred_check_branch
          %580 = sbr.rel (%p578) target = $region76
        $region75: #{tpu_custom_call.1} parent=23 // pred_region
          %p581 = scmp.lt.s32.totalorder %s24, 1
          %s582 = scalar_select %p581, %s24, 1
          %s583 = scalar_lea.vmem %s14, %s582
        $region76: #{tpu_custom_call.1} parent=23 // pred_fallthru
          _
      $region24: #{tpu_custom_call.1} parent=5 // pred_fallthru
        _
      %p584 = scmp.le.s32.totalorder 1, %s24
      %p585 = scmp.lt.s32.totalorder %s24, 3
      %p586 = pnand %p584, %p585
      %p587 = pneg %p586
      // Predicated region
      $region77: #{tpu_custom_call.1} parent=5 // pred_check
        _
      $region78: #{tpu_custom_call.1} parent=5 // pred_check_branch
        %589 = sbr.rel (%p586) target = $region80
      $region79: #{tpu_custom_call.1} parent=5 // pred_region
        %s590 = ssub.s32 %s24, 1
        // Predicated region
        $region81: #{tpu_custom_call.1} parent=79 // pred_check
          %p591 = pneg %p45
        $region82: #{tpu_custom_call.1} parent=79 // pred_check_branch
          %593 = sbr.rel (%p591) target = $region84
        $region83: #{tpu_custom_call.1} parent=79 // pred_region
          %595 = dma.done [#allocation3], 256
        $region84: #{tpu_custom_call.1} parent=79 // pred_fallthru
          _
        // Predicated region
        $region85: #{tpu_custom_call.1} parent=79 // pred_check
          %p596 = pneg %p66
        $region86: #{tpu_custom_call.1} parent=79 // pred_check_branch
          %598 = sbr.rel (%p596) target = $region88
        $region87: #{tpu_custom_call.1} parent=79 // pred_region
          %600 = dma.done [#allocation6], 256
        $region88: #{tpu_custom_call.1} parent=79 // pred_fallthru
          _
        %s601 = sand.u32 %s29, 1
        %s602 = scalar_lea.sflag [#allocation3], %s601
        %s603 = sand.u32 %s79, 1
        %s604 = scalar_lea.vmem [#allocation7], %s603
        // Predicated region
        $region89: #{tpu_custom_call.1} parent=79 // pred_check
          %p605 = pneg %p92
        $region90: #{tpu_custom_call.1} parent=79 // pred_check_branch
          %607 = sbr.rel (%p605) target = $region92
        $region91: #{tpu_custom_call.1} parent=79 // pred_region
          %609 = dma.done %s602, 16
        $region92: #{tpu_custom_call.1} parent=79 // pred_fallthru
          _
        %s610 = sand.u32 %s29, 1
        %s611 = scalar_lea.sflag [#allocation3], %s610
        %s612 = sand.u32 %s105, 1
        %s613 = scalar_lea.vmem [#allocation8], %s612
        // Predicated region
        $region93: #{tpu_custom_call.1} parent=79 // pred_check
          %p614 = pneg %p118
        $region94: #{tpu_custom_call.1} parent=79 // pred_check_branch
          %616 = sbr.rel (%p614) target = $region96
        $region95: #{tpu_custom_call.1} parent=79 // pred_region
          %618 = dma.done %s611, 16
        $region96: #{tpu_custom_call.1} parent=79 // pred_fallthru
          _
        %p619 = pneg %p45
        %p620 = pneg %p42
        %p621 = pneg %p66
        %p622 = pneg %p63
        %s623 = sand.u32 %s29, 1
        %s624 = scalar_lea.sflag [#allocation3], %s623
        %s625 = sand.u32 %s79, 1
        %s626 = scalar_lea.vmem [#allocation7], %s625
        %p627 = pneg %p92
        %p628 = pneg %p89
        %s629 = sand.u32 %s29, 1
        %s630 = scalar_lea.sflag [#allocation3], %s629
        %s631 = sand.u32 %s105, 1
        %s632 = scalar_lea.vmem [#allocation8], %s631
        %p633 = pneg %p118
        %p634 = pneg %p115
        %p635 = scmp.lt.s32.totalorder %s29, 1
        %s636 = scalar_select %p635, %s29, 1
        %s637 = smul.addr %s636, 4
        %s638 = smul.addr %s637, 4
        %s639 = scalar_lea.vmem %s4, %s638
        %p640 = pneg %p144
        %p641 = pneg %p141
        %p642 = scmp.lt.s32.totalorder %s29, 1
        %s643 = scalar_select %p642, %s29, 1
        %s644 = smul.addr %s643, 4
        %s645 = smul.addr %s644, 4
        %s646 = scalar_lea.vmem %s5, %s645
        %p647 = pneg %p170
        %p648 = pneg %p167
        %p649 = scmp.lt.s32.totalorder %s29, 1
        %s650 = scalar_select %p649, %s29, 1
        %s651 = smul.addr %s650, 4
        %s652 = smul.addr %s651, 4
        %s653 = scalar_lea.vmem %s6, %s652
        %p654 = pneg %p196
        %p655 = pneg %p193
        %p656 = scmp.lt.s32.totalorder %s29, 1
        %s657 = scalar_select %p656, %s29, 1
        %s658 = smul.addr %s657, 4
        %s659 = smul.addr %s658, 4
        %s660 = scalar_lea.vmem %s7, %s659
        %p661 = pneg %p222
        %p662 = pneg %p219
        %p663 = scmp.lt.s32.totalorder %s29, 1
        %s664 = scalar_select %p663, %s29, 1
        %s665 = scalar_lea.vmem %s8, %s664
        %p666 = pneg %p248
        %p667 = pneg %p245
        %p668 = scmp.lt.s32.totalorder %s29, 1
        %s669 = scalar_select %p668, %s29, 1
        %s670 = scalar_lea.vmem %s9, %s669
        %p671 = pneg %p274
        %p672 = pneg %p271
        %p673 = scmp.lt.s32.totalorder %s29, 1
        %s674 = scalar_select %p673, %s29, 1
        %s675 = scalar_lea.vmem %s10, %s674
        %p676 = pneg %p300
        %p677 = pneg %p297
        %p678 = scmp.lt.s32.totalorder %s29, 1
        %s679 = scalar_select %p678, %s29, 1
        %s680 = smul.addr %s679, 4
        %s681 = smul.addr %s680, 4
        %s682 = scalar_lea.vmem %s11, %s681
        %p683 = pneg %p326
        %p684 = pneg %p323
        %p685 = scmp.lt.s32.totalorder %s29, 1
        %s686 = scalar_select %p685, %s29, 1
        %s687 = scalar_lea.vmem %s12, %s686
        %p688 = pneg %p352
        %p689 = pneg %p349
        %p690 = scmp.lt.s32.totalorder %s29, 1
        %s691 = scalar_select %p690, %s29, 1
        %s692 = smul.addr %s691, 16
        %s693 = smul.addr %s692, 4
        %s694 = scalar_lea.vmem %s13, %s693
        %p695 = pneg %p378
        %p696 = pneg %p375
        %p697 = scmp.lt.s32.totalorder %s29, 1
        %s698 = scalar_select %p697, %s29, 1
        %s699 = scalar_lea.vmem %s14, %s698
        %p700 = pneg %p404
        %p701 = pneg %p401
        %p702 = pneg %p425
        %p703 = pneg %p422
        %p704 = scmp.lt.s32.totalorder %s29, 1
        %s705 = scalar_select %p704, %s29, 1
        %s706 = smul.addr %s705, 4
        %s707 = smul.addr %s706, 4
        %s708 = scalar_lea.vmem %s4, %s707
        %p709 = scmp.lt.s32.totalorder %s29, 1
        %s710 = scalar_select %p709, %s29, 1
        %s711 = smul.addr %s710, 4
        %s712 = smul.addr %s711, 4
        %s713 = scalar_lea.vmem %s5, %s712
        %p714 = scmp.lt.s32.totalorder %s29, 1
        %s715 = scalar_select %p714, %s29, 1
        %s716 = smul.addr %s715, 4
        %s717 = smul.addr %s716, 4
        %s718 = scalar_lea.vmem %s6, %s717
        %p719 = scmp.lt.s32.totalorder %s29, 1
        %s720 = scalar_select %p719, %s29, 1
        %s721 = smul.addr %s720, 4
        %s722 = smul.addr %s721, 4
        %s723 = scalar_lea.vmem %s7, %s722
        %p724 = scmp.lt.s32.totalorder %s29, 1
        %s725 = scalar_select %p724, %s29, 1
        %s726 = scalar_lea.vmem %s8, %s725
        %p727 = scmp.lt.s32.totalorder %s29, 1
        %s728 = scalar_select %p727, %s29, 1
        %s729 = scalar_lea.vmem %s9, %s728
        %p730 = scmp.lt.s32.totalorder %s29, 1
        %s731 = scalar_select %p730, %s29, 1
        %s732 = scalar_lea.vmem %s10, %s731
        %p733 = scmp.lt.s32.totalorder %s29, 1
        %s734 = scalar_select %p733, %s29, 1
        %s735 = smul.addr %s734, 4
        %s736 = smul.addr %s735, 4
        %s737 = scalar_lea.vmem %s11, %s736
        %p738 = scmp.lt.s32.totalorder %s29, 1
        %s739 = scalar_select %p738, %s29, 1
        %s740 = scalar_lea.vmem %s12, %s739
        %p741 = scmp.lt.s32.totalorder %s29, 1
        %s742 = scalar_select %p741, %s29, 1
        %s743 = smul.addr %s742, 16
        %s744 = smul.addr %s743, 4
        %s745 = scalar_lea.vmem %s13, %s744
        %p746 = scmp.lt.s32.totalorder %s29, 1
        %s747 = scalar_select %p746, %s29, 1
        %s748 = scalar_lea.vmem %s14, %s747
        %p750 = scmp.eq.s32.totalorder %s29, 0
        // Predicated region
        $region97: #{tpu_custom_call.1} parent=79 // pred_check
          %p751 = pneg %p750
        $region98: #{tpu_custom_call.1} parent=79 // pred_check_branch
          %753 = sbr.rel (%p751) target = $region100
        $region99: #{tpu_custom_call.1} parent=79 // pred_region
          %v754 = vld [vmem:[#allocation2] sm:$0xff]
          %v755 = vld [vmem:[#allocation2 + $0x8] sm:$0xff]
          %vm756 = vcmask 261120
          %757 = vst.msk [vmem:[#allocation9] sm:$0xff] %vm756, %v754
          %758 = vst.msk [vmem:[#allocation9 + $0x8] sm:$0xff] %vm756, %v755
        $region100: #{tpu_custom_call.1} parent=79 // pred_fallthru
          _
        %v759 = vld [vmem:[#allocation9] sm:$0xff]
        %v760 = vld [vmem:[#allocation9 + $0x8] sm:$0xff]
        %v761 = vld [vmem:[%s604] sm:$0x1]
        %v762 = vld [vmem:[%s613] sm:$0x1]
        %vm763 = vcmask 261120
        %v764 = vsel %vm763, %v759, 0.0
        %765 = vadd.xlane.f32.xlu0 %v764
        %v766 = vpop.xlane.xlu0 %765
        %v767 = vsel %vm763, %v760, 0.0
        %768 = vadd.xlane.f32.xlu0 %v767
        %v769 = vpop.xlane.xlu0 %768
        %v770 = vrcp.pop 32.0
        %v771 = vmul.f32 32.0, %v770
        %v772 = vsub.f32 1.0, %v771
        %v773 = vmul.f32 %v770, %v772
        %v774 = vadd.f32 %v770, %v773
        %vm775 = vweird.f32 %v770
        %v776 = vsel %vm775, %v770, %v774
        %v777 = vmul.f32 %v766, %v776
        %v778 = vmul.f32 %v769, %v776
        %v779 = vsub.f32 %v759, %v777
        %v780 = vsub.f32 %v760, %v778
        %v781 = vmul.f32 %v779, %v779
        %v782 = vmul.f32 %v780, %v780
        %v783 = vsel %vm763, %v781, 0.0
        %784 = vadd.xlane.f32.xlu0 %v783
        %v785 = vpop.xlane.xlu0 %784
        %v786 = vsel %vm763, %v782, 0.0
        %787 = vadd.xlane.f32.xlu0 %v786
        %v788 = vpop.xlane.xlu0 %787
        %v789 = vmul.f32 %v785, %v776
        %v790 = vmul.f32 %v788, %v776
        %v791 = vadd.f32 %v789, 1e-05
        %v792 = vadd.f32 %v790, 1e-05
        %v793 = vrsqrt.pop %v791
        %v794 = vmul.f32 %v793, %v791
        %v795 = vmul.f32 %v794, %v793
        %v796 = vmul.f32 0.5, %v795
        %v797 = vsub.f32 1.5, %v796
        %v798 = vmul.f32 %v793, %v797
        %vm799 = vweird.f32 %v791
        %vm800 = vweird.f32 %v793
        %vm801 = vmor %vm799, %vm800
        %v802 = vsel %vm801, %v793, %v798
        %v803 = vrsqrt.pop %v792
        %v804 = vmul.f32 %v803, %v792
        %v805 = vmul.f32 %v804, %v803
        %v806 = vmul.f32 0.5, %v805
        %v807 = vsub.f32 1.5, %v806
        %v808 = vmul.f32 %v803, %v807
        %vm809 = vweird.f32 %v792
        %vm810 = vweird.f32 %v803
        %vm811 = vmor %vm809, %vm810
        %v812 = vsel %vm811, %v803, %v808
        %v813 = vmul.f32 %v779, %v802
        %v814 = vmul.f32 %v780, %v812
        %v816 = vperm.slane %v761, 0
        %v818 = vmul.f32 %v816, %v813
        %v819 = vmul.f32 %v816, %v814
        %v821 = vperm.slane %v762, 0
        %v823 = vadd.f32 %v818, %v821
        %v824 = vadd.f32 %v819, %v821
        %v825 = vpack.c.bf16 %v824, %v823
        %v826 = vld [vmem:[%s708] sm:$0xf]
        %v827 = vld [vmem:[%s708 + $0x4] sm:$0xf]
        %v828 = vld [vmem:[%s708 + $0x8] sm:$0xf]
        %v829 = vld [vmem:[%s708 + $0xc] sm:$0xf]
        %v834 = vunpack.c.l.b16 %v826
        %v835 = vunpack.c.l.b16 %v827
        %v836 = vunpack.c.l.b16 %v828
        %v837 = vunpack.c.l.b16 %v829
        %v838 = vpack.c.b16 %v835, %v834
        %v839 = vpack.c.b16 %v837, %v836
        %v843 = vsel %vm763, %v825, 0
        %845 = vmatpush.bf16.msra.mxu0 0
        %846 = vmatpush.bf16.msra.mxu0 0
        %847 = vmatpush.bf16.msra.mxu0 0
        %848 = vmatpush.bf16.msra.mxu0 0
        %849 = vmatpush.bf16.msra.mxu0 0
        %850 = vmatpush.bf16.msra.mxu0 0
        %851 = vmatpush.bf16.msra.mxu0 %v839
        %852 = vmatpush.bf16.msra.mxu0 %v838
        %853 = vmatmul.bf16.gmra.mxu0 %v843
        %v854 = vpop.f32.mrf.mxu0
        %v855 = vadd.f32 0.0, %v854
        %v856 = vpop.f32.mrf.mxu0
        %v857 = vadd.f32 0.0, %v856
        %858 = vdwg.mxu0
        %v859 = vld [vmem:[%s713] sm:$0xf]
        %v860 = vld [vmem:[%s713 + $0x4] sm:$0xf]
        %v861 = vld [vmem:[%s713 + $0x8] sm:$0xf]
        %v862 = vld [vmem:[%s713 + $0xc] sm:$0xf]
        %v867 = vunpack.c.l.b16 %v859
        %v868 = vunpack.c.l.b16 %v860
        %v869 = vunpack.c.l.b16 %v861
        %v870 = vunpack.c.l.b16 %v862
        %v871 = vpack.c.b16 %v868, %v867
        %v872 = vpack.c.b16 %v870, %v869
        %875 = vmatpush.bf16.msra.mxu0 0
        %876 = vmatpush.bf16.msra.mxu0 0
        %877 = vmatpush.bf16.msra.mxu0 0
        %878 = vmatpush.bf16.msra.mxu0 0
        %879 = vmatpush.bf16.msra.mxu0 0
        %880 = vmatpush.bf16.msra.mxu0 0
        %881 = vmatpush.bf16.msra.mxu0 %v872
        %882 = vmatpush.bf16.msra.mxu0 %v871
        %883 = vmatmul.bf16.gmra.mxu0 %v843
        %v884 = vpop.f32.mrf.mxu0
        %v885 = vadd.f32 0.0, %v884
        %v886 = vpop.f32.mrf.mxu0
        %v887 = vadd.f32 0.0, %v886
        %888 = vdwg.mxu0
        %v889 = vld [vmem:[%s718] sm:$0xf]
        %v890 = vld [vmem:[%s718 + $0x4] sm:$0xf]
        %v891 = vld [vmem:[%s718 + $0x8] sm:$0xf]
        %v892 = vld [vmem:[%s718 + $0xc] sm:$0xf]
        %v897 = vunpack.c.l.b16 %v889
        %v898 = vunpack.c.l.b16 %v890
        %v899 = vunpack.c.l.b16 %v891
        %v900 = vunpack.c.l.b16 %v892
        %v901 = vpack.c.b16 %v898, %v897
        %v902 = vpack.c.b16 %v900, %v899
        %905 = vmatpush.bf16.msra.mxu0 0
        %906 = vmatpush.bf16.msra.mxu0 0
        %907 = vmatpush.bf16.msra.mxu0 0
        %908 = vmatpush.bf16.msra.mxu0 0
        %909 = vmatpush.bf16.msra.mxu0 0
        %910 = vmatpush.bf16.msra.mxu0 0
        %911 = vmatpush.bf16.msra.mxu0 %v902
        %912 = vmatpush.bf16.msra.mxu0 %v901
        %913 = vmatmul.bf16.gmra.mxu0 %v843
        %v914 = vpop.f32.mrf.mxu0
        %v915 = vadd.f32 0.0, %v914
        %v916 = vpop.f32.mrf.mxu0
        %v917 = vadd.f32 0.0, %v916
        %918 = vdwg.mxu0
        %v919 = vld [vmem:[#allocation5] sm:$0xff]
        %v920 = vld [vmem:[#allocation5 + $0x8] sm:$0xff]
        %v921 = vld [vmem:[%s723] sm:$0xf]
        %v922 = vld [vmem:[%s723 + $0x4] sm:$0xf]
        %v923 = vld [vmem:[%s723 + $0x8] sm:$0xf]
        %v924 = vld [vmem:[%s723 + $0xc] sm:$0xf]
        %v925 = vpack.c.bf16 %v857, %v855
        %v926 = vpack.c.bf16 %v887, %v885
        %v927 = vpack.c.bf16 %v917, %v915
        %vm928 = vcmask 64512
        %v930 = vsel %vm928, %v925, 0
        %v933 = vsel %vm928, %v926, 0
        %935 = vmatpush.bf16.xpose.msra.mxu0 0
        %936 = vmatpush.bf16.xpose.msra.mxu0 0
        %937 = vmatpush.bf16.xpose.msra.mxu0 0
        %938 = vmatpush.bf16.xpose.msra.mxu0 0
        %939 = vmatpush.bf16.xpose.msra.mxu0 0
        %940 = vmatpush.bf16.xpose.msra.mxu0 0
        %941 = vmatpush.bf16.xpose.msra.mxu0 0
        %942 = vmatpush.bf16.xpose.msra.mxu0 %v933
        %943 = vmatmul.bf16.gmra.mxu0 %v930
        %v944 = vpop.f32.mrf.mxu0
        %v945 = vadd.f32 0.0, %v944
        %v946 = vpop.f32.mrf.mxu0
        %v947 = vadd.f32 0.0, %v946
        %948 = vdwg.mxu0
        %v949 = vmul.f32 %v945, 0.35355338
        %v950 = vmul.f32 %v947, 0.35355338
        %v951 = vadd.f32 %v949, %v919
        %v952 = vadd.f32 %v950, %v920
        %vm953 = vcmask 130048
        %v954 = vsel %vm953, %v951, -inf
        %955 = vmax.xlane.f32.xlu0 %v954
        %v956 = vpop.xlane.xlu0 %955
        %v957 = vsel %vm953, %v952, -inf
        %958 = vmax.xlane.f32.xlu0 %v957
        %v959 = vpop.xlane.xlu0 %958
        %v960 = vsub.f32 %v951, %v956
        %v961 = vsub.f32 %v952, %v959
        %v962 = vmul.f32 %v960, 1.442695
        %v963 = vpow.pop %v962
        %v964 = vmul.f32 %v961, 1.442695
        %v965 = vpow.pop %v964
        %v966 = vsel %vm953, %v963, 0.0
        %967 = vadd.xlane.f32.xlu0 %v966
        %v968 = vpop.xlane.xlu0 %967
        %v969 = vsel %vm953, %v965, 0.0
        %970 = vadd.xlane.f32.xlu0 %v969
        %v971 = vpop.xlane.xlu0 %970
        %v972 = vrcp.pop %v968
        %v973 = vrcp.pop %v971
        %v974 = vmul.f32 %v963, %v972
        %v975 = vmul.f32 %v965, %v973
        %v976 = vpack.c.bf16 %v975, %v974
        %v978 = vsel %vm953, %v976, 0
        %980 = vmatpush.bf16.msra.mxu0 0
        %981 = vmatpush.bf16.msra.mxu0 0
        %982 = vmatpush.bf16.msra.mxu0 0
        %983 = vmatpush.bf16.msra.mxu0 0
        %984 = vmatpush.bf16.msra.mxu0 0
        %985 = vmatpush.bf16.msra.mxu0 0
        %986 = vmatpush.bf16.msra.mxu0 0
        %987 = vmatpush.bf16.msra.mxu0 %v927
        %988 = vmatmul.bf16.gmra.mxu0 %v978
        %v989 = vpop.f32.mrf.mxu0
        %v990 = vadd.f32 0.0, %v989
        %v991 = vpop.f32.mrf.mxu0
        %v992 = vadd.f32 0.0, %v991
        %993 = vdwg.mxu0
        %v994 = vpack.c.bf16 %v992, %v990
        %996 = vrot.lane.b32.xlu0 %v925, 120
        %v997 = vpop.permute.xlu0 %996
        %999 = vrot.lane.b32.xlu0 %v926, 120
        %v1000 = vpop.permute.xlu0 %999
        %v1002 = vsel %vm928, %v997, 0
        %v1005 = vsel %vm928, %v1000, 0
        %1007 = vmatpush.bf16.xpose.msra.mxu0 0
        %1008 = vmatpush.bf16.xpose.msra.mxu0 0
        %1009 = vmatpush.bf16.xpose.msra.mxu0 0
        %1010 = vmatpush.bf16.xpose.msra.mxu0 0
        %1011 = vmatpush.bf16.xpose.msra.mxu0 0
        %1012 = vmatpush.bf16.xpose.msra.mxu0 0
        %1013 = vmatpush.bf16.xpose.msra.mxu0 0
        %1014 = vmatpush.bf16.xpose.msra.mxu0 %v1005
        %1015 = vmatmul.bf16.gmra.mxu0 %v1002
        %v1016 = vpop.f32.mrf.mxu0
        %v1017 = vadd.f32 0.0, %v1016
        %v1018 = vpop.f32.mrf.mxu0
        %v1019 = vadd.f32 0.0, %v1018
        %1020 = vdwg.mxu0
        %v1021 = vmul.f32 %v1017, 0.35355338
        %v1022 = vmul.f32 %v1019, 0.35355338
        %v1023 = vadd.f32 %v1021, %v919
        %v1024 = vadd.f32 %v1022, %v920
        %v1025 = vsel %vm953, %v1023, -inf
        %1026 = vmax.xlane.f32.xlu0 %v1025
        %v1027 = vpop.xlane.xlu0 %1026
        %v1028 = vsel %vm953, %v1024, -inf
        %1029 = vmax.xlane.f32.xlu0 %v1028
        %v1030 = vpop.xlane.xlu0 %1029
        %v1031 = vsub.f32 %v1023, %v1027
        %v1032 = vsub.f32 %v1024, %v1030
        %v1033 = vmul.f32 %v1031, 1.442695
        %v1034 = vpow.pop %v1033
        %v1035 = vmul.f32 %v1032, 1.442695
        %v1036 = vpow.pop %v1035
        %v1037 = vsel %vm953, %v1034, 0.0
        %1038 = vadd.xlane.f32.xlu0 %v1037
        %v1039 = vpop.xlane.xlu0 %1038
        %v1040 = vsel %vm953, %v1036, 0.0
        %1041 = vadd.xlane.f32.xlu0 %v1040
        %v1042 = vpop.xlane.xlu0 %1041
        %v1043 = vrcp.pop %v1039
        %v1044 = vrcp.pop %v1042
        %v1045 = vmul.f32 %v1034, %v1043
        %v1046 = vmul.f32 %v1036, %v1044
        %v1047 = vpack.c.bf16 %v1046, %v1045
        %1049 = vrot.lane.b32.xlu0 %v927, 120
        %v1050 = vpop.permute.xlu0 %1049
        %v1053 = vsel %vm953, %v1047, 0
        %1055 = vmatpush.bf16.msra.mxu0 0
        %1056 = vmatpush.bf16.msra.mxu0 0
        %1057 = vmatpush.bf16.msra.mxu0 0
        %1058 = vmatpush.bf16.msra.mxu0 0
        %1059 = vmatpush.bf16.msra.mxu0 0
        %1060 = vmatpush.bf16.msra.mxu0 0
        %1061 = vmatpush.bf16.msra.mxu0 0
        %1062 = vmatpush.bf16.msra.mxu0 %v1050
        %1063 = vmatmul.bf16.gmra.mxu0 %v1053
        %v1064 = vpop.f32.mrf.mxu0
        %v1065 = vadd.f32 0.0, %v1064
        %v1066 = vpop.f32.mrf.mxu0
        %v1067 = vadd.f32 0.0, %v1066
        %1068 = vdwg.mxu0
        %v1069 = vpack.c.bf16 %v1067, %v1065
        %v1071 = vsel %vm928, %v1069, 0
        %vm1073 = vcmask 1043456
        %v1075 = vsel %vm1073, %v922, 0
        %1077 = vmatpush.bf16.msra.mxu0 0
        %1078 = vmatpush.bf16.msra.mxu0 0
        %1079 = vmatpush.bf16.msra.mxu0 0
        %1080 = vmatpush.bf16.msra.mxu0 0
        %1081 = vmatpush.bf16.msra.mxu0 0
        %1082 = vmatpush.bf16.msra.mxu0 0
        %1083 = vmatpush.bf16.msra.mxu0 0
        %1084 = vmatpush.bf16.msra.mxu0 %v1075
        %1085 = vmatmul.bf16.gmra.mxu0 %v1071
        %v1086 = vpop.f32.mrf.mxu0
        %v1087 = vadd.f32 0.0, %v1086
        %v1088 = vpop.f32.mrf.mxu0
        %v1089 = vadd.f32 0.0, %v1088
        %1090 = vdwg.mxu0
        %v1092 = vsel %vm928, %v994, 0
        %v1095 = vsel %vm1073, %v921, 0
        %1097 = vmatpush.bf16.msra.mxu0 0
        %1098 = vmatpush.bf16.msra.mxu0 0
        %1099 = vmatpush.bf16.msra.mxu0 0
        %1100 = vmatpush.bf16.msra.mxu0 0
        %1101 = vmatpush.bf16.msra.mxu0 0
        %1102 = vmatpush.bf16.msra.mxu0 0
        %1103 = vmatpush.bf16.msra.mxu0 0
        %1104 = vmatpush.bf16.msra.mxu0 %v1095
        %1105 = vmatmul.bf16.gmra.mxu0 %v1092
        %v1106 = vpop.f32.mrf.mxu0
        %v1107 = vadd.f32 %v1087, %v1106
        %v1108 = vpop.f32.mrf.mxu0
        %v1109 = vadd.f32 %v1089, %v1108
        %1110 = vdwg.mxu0
        %1111 = vrot.lane.b32.xlu0 %v925, 112
        %v1112 = vpop.permute.xlu0 %1111
        %1113 = vrot.lane.b32.xlu0 %v926, 112
        %v1114 = vpop.permute.xlu0 %1113
        %v1116 = vsel %vm928, %v1112, 0
        %v1119 = vsel %vm928, %v1114, 0
        %1121 = vmatpush.bf16.xpose.msra.mxu0 0
        %1122 = vmatpush.bf16.xpose.msra.mxu0 0
        %1123 = vmatpush.bf16.xpose.msra.mxu0 0
        %1124 = vmatpush.bf16.xpose.msra.mxu0 0
        %1125 = vmatpush.bf16.xpose.msra.mxu0 0
        %1126 = vmatpush.bf16.xpose.msra.mxu0 0
        %1127 = vmatpush.bf16.xpose.msra.mxu0 0
        %1128 = vmatpush.bf16.xpose.msra.mxu0 %v1119
        %1129 = vmatmul.bf16.gmra.mxu0 %v1116
        %v1130 = vpop.f32.mrf.mxu0
        %v1131 = vadd.f32 0.0, %v1130
        %v1132 = vpop.f32.mrf.mxu0
        %v1133 = vadd.f32 0.0, %v1132
        %1134 = vdwg.mxu0
        %v1135 = vmul.f32 %v1131, 0.35355338
        %v1136 = vmul.f32 %v1133, 0.35355338
        %v1137 = vadd.f32 %v1135, %v919
        %v1138 = vadd.f32 %v1136, %v920
        %v1139 = vsel %vm953, %v1137, -inf
        %1140 = vmax.xlane.f32.xlu0 %v1139
        %v1141 = vpop.xlane.xlu0 %1140
        %v1142 = vsel %vm953, %v1138, -inf
        %1143 = vmax.xlane.f32.xlu0 %v1142
        %v1144 = vpop.xlane.xlu0 %1143
        %v1145 = vsub.f32 %v1137, %v1141
        %v1146 = vsub.f32 %v1138, %v1144
        %v1147 = vmul.f32 %v1145, 1.442695
        %v1148 = vpow.pop %v1147
        %v1149 = vmul.f32 %v1146, 1.442695
        %v1150 = vpow.pop %v1149
        %v1151 = vsel %vm953, %v1148, 0.0
        %1152 = vadd.xlane.f32.xlu0 %v1151
        %v1153 = vpop.xlane.xlu0 %1152
        %v1154 = vsel %vm953, %v1150, 0.0
        %1155 = vadd.xlane.f32.xlu0 %v1154
        %v1156 = vpop.xlane.xlu0 %1155
        %v1157 = vrcp.pop %v1153
        %v1158 = vrcp.pop %v1156
        %v1159 = vmul.f32 %v1148, %v1157
        %v1160 = vmul.f32 %v1150, %v1158
        %v1161 = vpack.c.bf16 %v1160, %v1159
        %1162 = vrot.lane.b32.xlu0 %v927, 112
        %v1163 = vpop.permute.xlu0 %1162
        %v1166 = vsel %vm953, %v1161, 0
        %1168 = vmatpush.bf16.msra.mxu0 0
        %1169 = vmatpush.bf16.msra.mxu0 0
        %1170 = vmatpush.bf16.msra.mxu0 0
        %1171 = vmatpush.bf16.msra.mxu0 0
        %1172 = vmatpush.bf16.msra.mxu0 0
        %1173 = vmatpush.bf16.msra.mxu0 0
        %1174 = vmatpush.bf16.msra.mxu0 0
        %1175 = vmatpush.bf16.msra.mxu0 %v1163
        %1176 = vmatmul.bf16.gmra.mxu0 %v1166
        %v1177 = vpop.f32.mrf.mxu0
        %v1178 = vadd.f32 0.0, %v1177
        %v1179 = vpop.f32.mrf.mxu0
        %v1180 = vadd.f32 0.0, %v1179
        %1181 = vdwg.mxu0
        %v1182 = vpack.c.bf16 %v1180, %v1178
        %v1184 = vsel %vm928, %v1182, 0
        %v1187 = vsel %vm1073, %v923, 0
        %1189 = vmatpush.bf16.msra.mxu0 0
        %1190 = vmatpush.bf16.msra.mxu0 0
        %1191 = vmatpush.bf16.msra.mxu0 0
        %1192 = vmatpush.bf16.msra.mxu0 0
        %1193 = vmatpush.bf16.msra.mxu0 0
        %1194 = vmatpush.bf16.msra.mxu0 0
        %1195 = vmatpush.bf16.msra.mxu0 0
        %1196 = vmatpush.bf16.msra.mxu0 %v1187
        %1197 = vmatmul.bf16.gmra.mxu0 %v1184
        %v1198 = vpop.f32.mrf.mxu0
        %v1199 = vadd.f32 0.0, %v1198
        %v1200 = vpop.f32.mrf.mxu0
        %v1201 = vadd.f32 0.0, %v1200
        %1202 = vdwg.mxu0
        %v1203 = vadd.f32 %v1107, %v1199
        %v1204 = vadd.f32 %v1109, %v1201
        %1205 = vrot.lane.b32.xlu0 %v925, 104
        %v1206 = vpop.permute.xlu0 %1205
        %1207 = vrot.lane.b32.xlu0 %v926, 104
        %v1208 = vpop.permute.xlu0 %1207
        %v1210 = vsel %vm928, %v1206, 0
        %v1213 = vsel %vm928, %v1208, 0
        %1215 = vmatpush.bf16.xpose.msra.mxu0 0
        %1216 = vmatpush.bf16.xpose.msra.mxu0 0
        %1217 = vmatpush.bf16.xpose.msra.mxu0 0
        %1218 = vmatpush.bf16.xpose.msra.mxu0 0
        %1219 = vmatpush.bf16.xpose.msra.mxu0 0
        %1220 = vmatpush.bf16.xpose.msra.mxu0 0
        %1221 = vmatpush.bf16.xpose.msra.mxu0 0
        %1222 = vmatpush.bf16.xpose.msra.mxu0 %v1213
        %1223 = vmatmul.bf16.gmra.mxu0 %v1210
        %v1224 = vpop.f32.mrf.mxu0
        %v1225 = vadd.f32 0.0, %v1224
        %v1226 = vpop.f32.mrf.mxu0
        %v1227 = vadd.f32 0.0, %v1226
        %1228 = vdwg.mxu0
        %v1229 = vmul.f32 %v1225, 0.35355338
        %v1230 = vmul.f32 %v1227, 0.35355338
        %v1231 = vadd.f32 %v1229, %v919
        %v1232 = vadd.f32 %v1230, %v920
        %v1233 = vsel %vm953, %v1231, -inf
        %1234 = vmax.xlane.f32.xlu0 %v1233
        %v1235 = vpop.xlane.xlu0 %1234
        %v1236 = vsel %vm953, %v1232, -inf
        %1237 = vmax.xlane.f32.xlu0 %v1236
        %v1238 = vpop.xlane.xlu0 %1237
        %v1239 = vsub.f32 %v1231, %v1235
        %v1240 = vsub.f32 %v1232, %v1238
        %v1241 = vmul.f32 %v1239, 1.442695
        %v1242 = vpow.pop %v1241
        %v1243 = vmul.f32 %v1240, 1.442695
        %v1244 = vpow.pop %v1243
        %v1245 = vsel %vm953, %v1242, 0.0
        %1246 = vadd.xlane.f32.xlu0 %v1245
        %v1247 = vpop.xlane.xlu0 %1246
        %v1248 = vsel %vm953, %v1244, 0.0
        %1249 = vadd.xlane.f32.xlu0 %v1248
        %v1250 = vpop.xlane.xlu0 %1249
        %v1251 = vrcp.pop %v1247
        %v1252 = vrcp.pop %v1250
        %v1253 = vmul.f32 %v1242, %v1251
        %v1254 = vmul.f32 %v1244, %v1252
        %v1255 = vpack.c.bf16 %v1254, %v1253
        %1256 = vrot.lane.b32.xlu0 %v927, 104
        %v1257 = vpop.permute.xlu0 %1256
        %v1260 = vsel %vm953, %v1255, 0
        %1262 = vmatpush.bf16.msra.mxu0 0
        %1263 = vmatpush.bf16.msra.mxu0 0
        %1264 = vmatpush.bf16.msra.mxu0 0
        %1265 = vmatpush.bf16.msra.mxu0 0
        %1266 = vmatpush.bf16.msra.mxu0 0
        %1267 = vmatpush.bf16.msra.mxu0 0
        %1268 = vmatpush.bf16.msra.mxu0 0
        %1269 = vmatpush.bf16.msra.mxu0 %v1257
        %1270 = vmatmul.bf16.gmra.mxu0 %v1260
        %v1271 = vpop.f32.mrf.mxu0
        %v1272 = vadd.f32 0.0, %v1271
        %v1273 = vpop.f32.mrf.mxu0
        %v1274 = vadd.f32 0.0, %v1273
        %1275 = vdwg.mxu0
        %v1276 = vpack.c.bf16 %v1274, %v1272
        %v1278 = vsel %vm928, %v1276, 0
        %v1281 = vsel %vm1073, %v924, 0
        %1283 = vmatpush.bf16.msra.mxu0 0
        %1284 = vmatpush.bf16.msra.mxu0 0
        %1285 = vmatpush.bf16.msra.mxu0 0
        %1286 = vmatpush.bf16.msra.mxu0 0
        %1287 = vmatpush.bf16.msra.mxu0 0
        %1288 = vmatpush.bf16.msra.mxu0 0
        %1289 = vmatpush.bf16.msra.mxu0 0
        %1290 = vmatpush.bf16.msra.mxu0 %v1281
        %1291 = vmatmul.bf16.gmra.mxu0 %v1278
        %v1292 = vpop.f32.mrf.mxu0
        %v1293 = vadd.f32 0.0, %v1292
        %v1294 = vpop.f32.mrf.mxu0
        %v1295 = vadd.f32 0.0, %v1294
        %1296 = vdwg.mxu0
        %v1297 = vadd.f32 %v1203, %v1293
        %v1298 = vadd.f32 %v1204, %v1295
        %v1299 = vadd.f32 %v759, %v1297
        %v1300 = vadd.f32 %v760, %v1298
        %v1301 = vld [vmem:[%s726] sm:$0x1]
        %v1303 = vperm.slane %v1301, 0
        %v1305 = vadd.f32 %v1299, %v1303
        %v1306 = vadd.f32 %v1300, %v1303
        %v1307 = vld [vmem:[%s729] sm:$0x1]
        %v1308 = vld [vmem:[%s732] sm:$0x1]
        %v1309 = vsel %vm763, %v1305, 0.0
        %1310 = vadd.xlane.f32.xlu0 %v1309
        %v1311 = vpop.xlane.xlu0 %1310
        %v1312 = vsel %vm763, %v1306, 0.0
        %1313 = vadd.xlane.f32.xlu0 %v1312
        %v1314 = vpop.xlane.xlu0 %1313
        %v1315 = vmul.f32 %v1311, %v776
        %v1316 = vmul.f32 %v1314, %v776
        %v1317 = vsub.f32 %v1305, %v1315
        %v1318 = vsub.f32 %v1306, %v1316
        %v1319 = vmul.f32 %v1317, %v1317
        %v1320 = vmul.f32 %v1318, %v1318
        %v1321 = vsel %vm763, %v1319, 0.0
        %1322 = vadd.xlane.f32.xlu0 %v1321
        %v1323 = vpop.xlane.xlu0 %1322
        %v1324 = vsel %vm763, %v1320, 0.0
        %1325 = vadd.xlane.f32.xlu0 %v1324
        %v1326 = vpop.xlane.xlu0 %1325
        %v1327 = vmul.f32 %v1323, %v776
        %v1328 = vmul.f32 %v1326, %v776
        %v1329 = vadd.f32 %v1327, 1e-05
        %v1330 = vadd.f32 %v1328, 1e-05
        %v1331 = vrsqrt.pop %v1329
        %v1332 = vmul.f32 %v1331, %v1329
        %v1333 = vmul.f32 %v1332, %v1331
        %v1334 = vmul.f32 0.5, %v1333
        %v1335 = vsub.f32 1.5, %v1334
        %v1336 = vmul.f32 %v1331, %v1335
        %vm1337 = vweird.f32 %v1329
        %vm1338 = vweird.f32 %v1331
        %vm1339 = vmor %vm1337, %vm1338
        %v1340 = vsel %vm1339, %v1331, %v1336
        %v1341 = vrsqrt.pop %v1330
        %v1342 = vmul.f32 %v1341, %v1330
        %v1343 = vmul.f32 %v1342, %v1341
        %v1344 = vmul.f32 0.5, %v1343
        %v1345 = vsub.f32 1.5, %v1344
        %v1346 = vmul.f32 %v1341, %v1345
        %vm1347 = vweird.f32 %v1330
        %vm1348 = vweird.f32 %v1341
        %vm1349 = vmor %vm1347, %vm1348
        %v1350 = vsel %vm1349, %v1341, %v1346
        %v1351 = vmul.f32 %v1317, %v1340
        %v1352 = vmul.f32 %v1318, %v1350
        %v1354 = vperm.slane %v1307, 0
        %v1356 = vmul.f32 %v1354, %v1351
        %v1357 = vmul.f32 %v1354, %v1352
        %v1359 = vperm.slane %v1308, 0
        %v1361 = vadd.f32 %v1356, %v1359
        %v1362 = vadd.f32 %v1357, %v1359
        %v1363 = vpack.c.bf16 %v1362, %v1361
        %v1364 = vld [vmem:[%s737] sm:$0xf]
        %v1365 = vld [vmem:[%s737 + $0x4] sm:$0xf]
        %v1366 = vld [vmem:[%s737 + $0x8] sm:$0xf]
        %v1367 = vld [vmem:[%s737 + $0xc] sm:$0xf]
        %v1368 = vld [vmem:[%s740] sm:$0x1]
        %v1370 = vperm.slane %v1368, 0
        %v1376 = vunpack.c.l.b16 %v1364
        %v1377 = vunpack.c.l.b16 %v1365
        %v1378 = vunpack.c.l.b16 %v1366
        %v1379 = vunpack.c.l.b16 %v1367
        %v1380 = vpack.c.b16 %v1377, %v1376
        %v1381 = vpack.c.b16 %v1379, %v1378
        %v1385 = vsel %vm763, %v1363, 0
        %1387 = vmatpush.bf16.msra.mxu0 0
        %1388 = vmatpush.bf16.msra.mxu0 0
        %1389 = vmatpush.bf16.msra.mxu0 0
        %1390 = vmatpush.bf16.msra.mxu0 0
        %1391 = vmatpush.bf16.msra.mxu0 0
        %1392 = vmatpush.bf16.msra.mxu0 0
        %1393 = vmatpush.bf16.msra.mxu0 %v1381
        %1394 = vmatpush.bf16.msra.mxu0 %v1380
        %1395 = vmatmul.bf16.gmra.mxu0 %v1385
        %v1396 = vpop.f32.mrf.mxu0
        %v1397 = vadd.f32 %v1370, %v1396
        %v1398 = vpop.f32.mrf.mxu0
        %v1399 = vadd.f32 %v1370, %v1398
        %1400 = vdwg.mxu0
        %v1401 = vmul.f32 %v1397, 0.5
        %v1402 = vmul.f32 %v1399, 0.5
        %v1403 = vmul.f32 %v1397, %v1397
        %v1404 = vmul.f32 %v1399, %v1399
        %v1405 = vmul.f32 %v1403, %v1397
        %v1406 = vmul.f32 %v1404, %v1399
        %v1407 = vmul.f32 %v1405, 0.044715
        %v1408 = vmul.f32 %v1406, 0.044715
        %v1409 = vadd.f32 %v1397, %v1407
        %v1410 = vadd.f32 %v1399, %v1408
        %v1411 = vmul.f32 %v1409, 0.7978846
        %v1412 = vmul.f32 %v1410, 0.7978846
        %v1413 = vtanh.pop %v1411
        %v1414 = vtanh.pop %v1412
        %v1415 = vadd.f32 %v1413, 1.0
        %v1416 = vadd.f32 %v1414, 1.0
        %v1417 = vmul.f32 %v1401, %v1415
        %v1418 = vmul.f32 %v1402, %v1416
        %v1419 = vpack.c.bf16 %v1418, %v1417
        %v1420 = vld [vmem:[%s745] sm:$0xf]
        %v1421 = vld [vmem:[%s745 + $0x4] sm:$0xf]
        %v1422 = vld [vmem:[%s745 + $0x8] sm:$0xf]
        %v1423 = vld [vmem:[%s745 + $0xc] sm:$0xf]
        %v1424 = vld [vmem:[%s745 + $0x10] sm:$0xf]
        %v1425 = vld [vmem:[%s745 + $0x14] sm:$0xf]
        %v1426 = vld [vmem:[%s745 + $0x18] sm:$0xf]
        %v1427 = vld [vmem:[%s745 + $0x1c] sm:$0xf]
        %v1428 = vld [vmem:[%s745 + $0x20] sm:$0xf]
        %v1429 = vld [vmem:[%s745 + $0x24] sm:$0xf]
        %v1430 = vld [vmem:[%s745 + $0x28] sm:$0xf]
        %v1431 = vld [vmem:[%s745 + $0x2c] sm:$0xf]
        %v1432 = vld [vmem:[%s745 + $0x30] sm:$0xf]
        %v1433 = vld [vmem:[%s745 + $0x34] sm:$0xf]
        %v1434 = vld [vmem:[%s745 + $0x38] sm:$0xf]
        %v1435 = vld [vmem:[%s745 + $0x3c] sm:$0xf]
        %v1436 = vld [vmem:[%s748] sm:$0x1]
        %v1438 = vperm.slane %v1436, 0
        %v1456 = vunpack.c.l.b16 %v1420
        %v1457 = vunpack.c.l.b16 %v1421
        %v1458 = vunpack.c.l.b16 %v1422
        %v1459 = vunpack.c.l.b16 %v1423
        %v1460 = vunpack.c.l.b16 %v1424
        %v1461 = vunpack.c.l.b16 %v1425
        %v1462 = vunpack.c.l.b16 %v1426
        %v1463 = vunpack.c.l.b16 %v1427
        %v1464 = vunpack.c.l.b16 %v1428
        %v1465 = vunpack.c.l.b16 %v1429
        %v1466 = vunpack.c.l.b16 %v1430
        %v1467 = vunpack.c.l.b16 %v1431
        %v1468 = vunpack.c.l.b16 %v1432
        %v1469 = vunpack.c.l.b16 %v1433
        %v1470 = vunpack.c.l.b16 %v1434
        %v1471 = vunpack.c.l.b16 %v1435
        %v1472 = vpack.c.b16 %v1457, %v1456
        %v1473 = vpack.c.b16 %v1459, %v1458
        %v1474 = vpack.c.b16 %v1461, %v1460
        %v1475 = vpack.c.b16 %v1463, %v1462
        %v1476 = vpack.c.b16 %v1465, %v1464
        %v1477 = vpack.c.b16 %v1467, %v1466
        %v1478 = vpack.c.b16 %v1469, %v1468
        %v1479 = vpack.c.b16 %v1471, %v1470
        %1488 = vmatpush.bf16.msra.mxu0 %v1479
        %1489 = vmatpush.bf16.msra.mxu0 %v1478
        %1490 = vmatpush.bf16.msra.mxu0 %v1477
        %1491 = vmatpush.bf16.msra.mxu0 %v1476
        %1492 = vmatpush.bf16.msra.mxu0 %v1475
        %1493 = vmatpush.bf16.msra.mxu0 %v1474
        %1494 = vmatpush.bf16.msra.mxu0 %v1473
        %1495 = vmatpush.bf16.msra.mxu0 %v1472
        %1496 = vmatmul.bf16.gmra.mxu0 %v1419
        %v1497 = vpop.f32.mrf.mxu0
        %v1498 = vadd.f32 %v1438, %v1497
        %v1499 = vpop.f32.mrf.mxu0
        %v1500 = vadd.f32 %v1438, %v1499
        %1501 = vdwg.mxu0
        %v1502 = vadd.f32 %v1305, %v1498
        %v1503 = vadd.f32 %v1306, %v1500
        %1504 = vst.msk [vmem:[#allocation9] sm:$0xff] %vm763, %v1502
        %1505 = vst.msk [vmem:[#allocation9 + $0x8] sm:$0xff] %vm763, %v1503
        // Predicated region
        $region101: #{tpu_custom_call.1} parent=79 // pred_check
          %p1506 = pneg %p422
        $region102: #{tpu_custom_call.1} parent=79 // pred_check_branch
          %1508 = sbr.rel (%p1506) target = $region104
        $region103: #{tpu_custom_call.1} parent=79 // pred_region
          %1510 = vsyncadd [#allocation4], 0
          %s1511 = sshll.u32 [#allocation9], 4
          %s1512 = int_to_ptr.vmem [resolvable:$true] %s1511
          %s1513 = sshll.u32 %s15, 4
          %s1514 = int_to_ptr.hbm [resolvable:$true] %s1513
          %1519 = dma.vmem_to_hbm [thread:$0]  %s1512, 256, %s1514, [#allocation4], 128, 128, 8
        $region104: #{tpu_custom_call.1} parent=79 // pred_fallthru
          _
        // Predicated region
        $region105: #{tpu_custom_call.1} parent=79 // pred_check
          %p1520 = pneg %p422
        $region106: #{tpu_custom_call.1} parent=79 // pred_check_branch
          %1522 = sbr.rel (%p1520) target = $region108
        $region107: #{tpu_custom_call.1} parent=79 // pred_region
          %1524 = dma.done [#allocation4], 256
        $region108: #{tpu_custom_call.1} parent=79 // pred_fallthru
          _
      $region80: #{tpu_custom_call.1} parent=5 // pred_fallthru
        _
      %p1525 = scmp.le.s32.totalorder 2, %s24
      // Predicated region
      $region109: #{tpu_custom_call.1} parent=5 // pred_check
        %p1526 = pneg %p1525
      $region110: #{tpu_custom_call.1} parent=5 // pred_check_branch
        %1528 = sbr.rel (%p1526) target = $region112
      $region111: #{tpu_custom_call.1} parent=5 // pred_region
        %s1529 = ssub.s32 %s24, 2
      $region112: #{tpu_custom_call.1} parent=5 // pred_fallthru
        _
    $region6: #{tpu_custom_call.1} parent=1 // loop_footer
      %s28 = sadd.s32 1, %s24
    $region7: #{tpu_custom_call.1} parent=1 // loop_footer_branch
      %23 = sbr.rel target = $region3
    $region8: #{tpu_custom_call.1} parent=1 // loop_exit
      _
    %1530 = vsyncpa [#allocation3], 1
    %s1531 = scalar_lea.sflag [#allocation3], 1
    %1532 = vsyncpa %s1531, 1
    %1533 = vsyncpa [#allocation6], 1
    %1534 = vsyncpa [#allocation4], 1
    %s1535 = scalar_lea.sflag [#allocation4], 1
    %1536 = vsyncpa %s1535, 1

</llo_original>
